<compile_context>
chip_gen: v7x
topology: tpu7x:2x2x1
jax: 0.10.0
libtpu: 0.0.40
codegen_flags: <defaults>
</compile_context>

<pallas_src>
import functools

import jax
import jax.numpy as jnp
from jax import lax
from jax.experimental import pallas as pl
from jax.experimental.pallas import tpu as pltpu

LN_EPS = 1e-5


def _layernorm_f32(x, w, b):
    mu = jnp.mean(x, axis=-1, keepdims=True)
    var = jnp.mean((x - mu) ** 2, axis=-1, keepdims=True)
    return (x - mu) * lax.rsqrt(var + LN_EPS) * w + b


def attn_mlp_block_kernel(
    xf_ref,                    # (1, N,  C) f32  full sequence (for K/V)
    xq_ref,                    # (1, TQ, C) f32  query-tile rows
    ln1w_ref, ln1b_ref,        # (1, C) f32
    wq_ref, wk_ref, wv_ref,    # (H, C, D) bf16  (softmax scale folded into wq)
    wprojh_ref,                # (H, D, C) bf16  per-head slice of Wproj
    bproj_ref,                 # (1, C) f32
    ln2w_ref, ln2b_ref,        # (1, C) f32
    w1_ref, b1_ref,            # (C, hid) bf16, (1, hid) f32
    w2_ref, b2_ref,            # (hid, C) bf16, (1, C) f32
    out_ref,                   # (1, TQ, C)
    *, num_heads: int,
):
    xf = xf_ref[0]                                   # (N,  C) f32
    xq = xq_ref[0]                                   # (TQ, C) f32
    TQ, C = xq.shape

    # ---- norm1 (f32), then bf16 operands for the MXU ----
    xnf_b = _layernorm_f32(xf, ln1w_ref[0], ln1b_ref[0]).astype(jnp.bfloat16)
    xnq_b = _layernorm_f32(xq, ln1w_ref[0], ln1b_ref[0]).astype(jnp.bfloat16)

    # ---- attention: per-head weights indexed on the leading axis (no lane
    #      slicing, no concatenate; heads accumulate straight into y) ----
    y = jnp.zeros((TQ, C), jnp.float32)
    for h in range(num_heads):                       # static unroll, H small
        q = jnp.dot(xnq_b, wq_ref[h], preferred_element_type=jnp.float32)  # (TQ, D)
        k = jnp.dot(xnf_b, wk_ref[h], preferred_element_type=jnp.float32)  # (N,  D)
        v = jnp.dot(xnf_b, wv_ref[h], preferred_element_type=jnp.float32)  # (N,  D)

        # scores = q @ k^T  (scale already folded into wq)
        s = lax.dot_general(q.astype(jnp.bfloat16), k.astype(jnp.bfloat16),
                            (((1,), (1,)), ((), ())),
                            preferred_element_type=jnp.float32)            # (TQ, N)
        s = s - jnp.max(s, axis=-1, keepdims=True)
        p = jnp.exp(s)
        p = p * pl.reciprocal(jnp.sum(p, axis=-1, keepdims=True), approx=True)

        o = jnp.dot(p.astype(jnp.bfloat16), v.astype(jnp.bfloat16),
                    preferred_element_type=jnp.float32)                    # (TQ, D)
        # head recombination folded into the per-head slice of Wproj
        y = y + jnp.dot(o.astype(jnp.bfloat16), wprojh_ref[h],
                        preferred_element_type=jnp.float32)                # (TQ, C)
    y = y + bproj_ref[0]

    x1 = xq + y                                      # residual 1 (f32)

    # ---- norm2 + MLP ----
    x1n_b = _layernorm_f32(x1, ln2w_ref[0], ln2b_ref[0]).astype(jnp.bfloat16)
    h1 = jnp.dot(x1n_b, w1_ref[...], preferred_element_type=jnp.float32) + b1_ref[0]
    h1 = jax.nn.gelu(h1, approximate=True)           # tanh GELU -> EUP slot
    h2 = jnp.dot(h1.astype(jnp.bfloat16), w2_ref[...],
                 preferred_element_type=jnp.float32) + b2_ref[0]
    out_ref[0] = (x1 + h2).astype(out_ref.dtype)


def attn_mlp_block(x, params, *, num_heads, q_block=None):
    B, N, C = x.shape
    H = num_heads
    D = C // H
    hid = params["w1"].shape[0]                      # torch layout (hid, C)
    scale = D ** (-0.5)
    f32, bf16 = jnp.float32, jnp.bfloat16

    # query-tile size: multiple of 8 dividing N (or the full N)
    if q_block is None:
        q_block = N
        for cand in (256, 128, 64, 32, 16, 8):
            if cand < N and N % cand == 0:
                q_block = cand
                break
    assert N % q_block == 0

    # --- wrapper-side weight re-packing (plain JAX, runs once) ---
    wqkv = params["wqkv"].astype(f32)                                   # (3C, C)
    wq = jnp.transpose(wqkv[0 * C:1 * C].reshape(H, D, C), (0, 2, 1)) * scale
    wk = jnp.transpose(wqkv[1 * C:2 * C].reshape(H, D, C), (0, 2, 1))
    wv = jnp.transpose(wqkv[2 * C:3 * C].reshape(H, D, C), (0, 2, 1))
    wq, wk, wv = wq.astype(bf16), wk.astype(bf16), wv.astype(bf16)      # (H, C, D)
    wprojh = jnp.transpose(params["wproj"].astype(f32).reshape(C, H, D),
                           (1, 2, 0)).astype(bf16)                      # (H, D, C)
    w1 = params["w1"].astype(f32).T.astype(bf16)                        # (C, hid)
    w2 = params["w2"].astype(f32).T.astype(bf16)                        # (hid, C)

    ln1w = params["ln1_w"].reshape(1, C).astype(f32)
    ln1b = params["ln1_b"].reshape(1, C).astype(f32)
    bproj = params["bproj"].reshape(1, C).astype(f32)
    ln2w = params["ln2_w"].reshape(1, C).astype(f32)
    ln2b = params["ln2_b"].reshape(1, C).astype(f32)
    b1 = params["b1"].reshape(1, hid).astype(f32)
    b2 = params["b2"].reshape(1, C).astype(f32)

    # --- explicit VMEM budget: actual buffers + headroom, capped at 64 MiB ---
    nbytes = lambda a: a.size * a.dtype.itemsize
    weight_b = sum(map(nbytes, (wq, wk, wv, wprojh, w1, w2)))
    small_b = sum(map(nbytes, (ln1w, ln1b, bproj, ln2w, ln2b, b1, b2)))
    io_b = 4 * (N * C + 2 * q_block * C)                   # x_full + x_tile + out
    inter_b = 4 * (4 * N * C + q_block * N + q_block * hid + 8 * q_block * C)
    vmem_limit = int(min(64 << 20,
                         max(8 << 20,
                             2 * (weight_b + small_b) + 2 * io_b + inter_b
                             + (2 << 20))))

    def _full(shape):
        zeros = (0,) * len(shape)
        return pl.BlockSpec(shape, lambda b, qt, _z=zeros: _z)

    return pl.pallas_call(
        functools.partial(attn_mlp_block_kernel, num_heads=num_heads),
        out_shape=jax.ShapeDtypeStruct((B, N, C), x.dtype),
        grid_spec=pltpu.PrefetchScalarGridSpec(
            num_scalar_prefetch=0,
            grid=(B, N // q_block),
            in_specs=[
                pl.BlockSpec((1, N, C), lambda b, qt: (b, 0, 0)),         # x (full seq)
                pl.BlockSpec((1, q_block, C), lambda b, qt: (b, qt, 0)),  # x (q tile)
                _full((1, C)), _full((1, C)),                             # ln1 w/b
                _full((H, C, D)), _full((H, C, D)), _full((H, C, D)),     # wq/wk/wv
                _full((H, D, C)),                                         # wproj per-head
                _full((1, C)),                                            # bproj
                _full((1, C)), _full((1, C)),                             # ln2 w/b
                _full((C, hid)), _full((1, hid)),                         # w1 / b1
                _full((hid, C)), _full((1, C)),                           # w2 / b2
            ],
            out_specs=pl.BlockSpec((1, q_block, C), lambda b, qt: (b, qt, 0)),
        ),
        compiler_params=pltpu.CompilerParams(
            dimension_semantics=("parallel", "parallel"),
            vmem_limit_bytes=vmem_limit),
    )(x, x, ln1w, ln1b, wq, wk, wv, wprojh, bproj, ln2w, ln2b, w1, b1, w2, b2)


def reference_block(x, params, *, num_heads):
    """Pure-JAX f32 reference mirroring the PyTorch forward (exact GELU)."""
    B, N, C = x.shape
    D = C // num_heads
    scale = D ** (-0.5)

    def ln(v, w, b):
        mu = jnp.mean(v, axis=-1, keepdims=True)
        var = jnp.mean((v - mu) ** 2, axis=-1, keepdims=True)
        return (v - mu) / jnp.sqrt(var + LN_EPS) * w + b

    xn = ln(x, params["ln1_w"], params["ln1_b"])
    qkv = xn @ params["wqkv"].T                                   # (B,N,3C)
    qkv = qkv.reshape(B, N, 3, num_heads, D).transpose(2, 0, 3, 1, 4)
    q, k, v = qkv[0], qkv[1], qkv[2]                              # (B,H,N,D)
    attn = jnp.einsum('bhnd,bhmd->bhnm', q, k) * scale
    attn = attn - jnp.max(attn, axis=-1, keepdims=True)
    attn = jax.nn.softmax(attn, axis=-1)
    y = jnp.einsum('bhnm,bhmd->bhnd', attn, v)
    y = y.transpose(0, 2, 1, 3).reshape(B, N, C)
    y = y @ params["wproj"].T + params["bproj"]
    x = x + y
    xn = ln(x, params["ln2_w"], params["ln2_b"])
    h = jax.nn.gelu(xn @ params["w1"].T + params["b1"], approximate=False)
    h = h @ params["w2"].T + params["b2"]
    return x + h


if __name__ == "__main__":
    B, N, C = 2, 16, 32
    num_heads = 4
    mlp_ratio = 4.0
    hid = int(C * mlp_ratio)

    key = jax.random.PRNGKey(0)
    ks = jax.random.split(key, 8)
    s = 0.02
    params = {
        "ln1_w": jnp.ones((C,), jnp.float32),
        "ln1_b": jnp.zeros((C,), jnp.float32),
        "wqkv": s * jax.random.normal(ks[0], (3 * C, C), jnp.float32),
        "wproj": s * jax.random.normal(ks[1], (C, C), jnp.float32),
        "bproj": s * jax.random.normal(ks[2], (C,), jnp.float32),
        "ln2_w": jnp.ones((C,), jnp.float32),
        "ln2_b": jnp.zeros((C,), jnp.float32),
        "w1": s * jax.random.normal(ks[3], (hid, C), jnp.float32),
        "b1": s * jax.random.normal(ks[4], (hid,), jnp.float32),
        "w2": s * jax.random.normal(ks[5], (C, hid), jnp.float32),
        "b2": s * jax.random.normal(ks[6], (C,), jnp.float32),
    }
    x = jax.random.normal(ks[7], (B, N, C), jnp.float32)

    out = attn_mlp_block(x, params, num_heads=num_heads, q_block=8)
    out = jax.block_until_ready(out)

    ref = reference_block(x, params, num_heads=num_heads)
    assert out.shape == (B, N, C)
    # bf16 MXU inputs + tanh GELU + approx reciprocal => loosened tolerance
    assert jnp.allclose(out, ref, atol=2e-2, rtol=2e-2), "mismatch vs reference"

    print("KERNEL_OK")
</pallas_src>

<mosaic_0001>
module attributes {stable_mosaic.version = 11 : i64} {
  func.func @attn_mlp_block_kernel(%arg0: i32, %arg1: i32, %arg2: memref<1x16x32xf32, #tpu.memory_space<vmem>>, %arg3: memref<1x8x32xf32, #tpu.memory_space<vmem>>, %arg4: memref<1x32xf32, #tpu.memory_space<vmem>>, %arg5: memref<1x32xf32, #tpu.memory_space<vmem>>, %arg6: memref<4x32x8xbf16, #tpu.memory_space<vmem>>, %arg7: memref<4x32x8xbf16, #tpu.memory_space<vmem>>, %arg8: memref<4x32x8xbf16, #tpu.memory_space<vmem>>, %arg9: memref<4x8x32xbf16, #tpu.memory_space<vmem>>, %arg10: memref<1x32xf32, #tpu.memory_space<vmem>>, %arg11: memref<1x32xf32, #tpu.memory_space<vmem>>, %arg12: memref<1x32xf32, #tpu.memory_space<vmem>>, %arg13: memref<32x128xbf16, #tpu.memory_space<vmem>>, %arg14: memref<1x128xf32, #tpu.memory_space<vmem>>, %arg15: memref<128x32xbf16, #tpu.memory_space<vmem>>, %arg16: memref<1x32xf32, #tpu.memory_space<vmem>>, %arg17: memref<1x8x32xf32, #tpu.memory_space<vmem>>) attributes {dimension_semantics = [#tpu.dimension_semantics<parallel>, #tpu.dimension_semantics<parallel>], iteration_bounds = array<i64: 2, 2>, scalar_prefetch = 0 : i64, scratch_operands = 0 : i64, tpu.core_type = #tpu.core_type<tc>, window_params = [{transform_indices = @transform_0, window_bounds = array<i64: 1, 16, 32>}, {transform_indices = @transform_1, window_bounds = array<i64: 1, 8, 32>}, {pipeline_mode = #tpu.pipeline_mode<synchronous>, transform_indices = @transform_2, window_bounds = array<i64: 1, 32>}, {pipeline_mode = #tpu.pipeline_mode<synchronous>, transform_indices = @transform_3, window_bounds = array<i64: 1, 32>}, {pipeline_mode = #tpu.pipeline_mode<synchronous>, transform_indices = @transform_4, window_bounds = array<i64: 4, 32, 8>}, {pipeline_mode = #tpu.pipeline_mode<synchronous>, transform_indices = @transform_5, window_bounds = array<i64: 4, 32, 8>}, {pipeline_mode = #tpu.pipeline_mode<synchronous>, transform_indices = @transform_6, window_bounds = array<i64: 4, 32, 8>}, {pipeline_mode = #tpu.pipeline_mode<synchronous>, transform_indices = @transform_7, window_bounds = array<i64: 4, 8, 32>}, {pipeline_mode = #tpu.pipeline_mode<synchronous>, transform_indices = @transform_8, window_bounds = array<i64: 1, 32>}, {pipeline_mode = #tpu.pipeline_mode<synchronous>, transform_indices = @transform_9, window_bounds = array<i64: 1, 32>}, {pipeline_mode = #tpu.pipeline_mode<synchronous>, transform_indices = @transform_10, window_bounds = array<i64: 1, 32>}, {pipeline_mode = #tpu.pipeline_mode<synchronous>, transform_indices = @transform_11, window_bounds = array<i64: 32, 128>}, {pipeline_mode = #tpu.pipeline_mode<synchronous>, transform_indices = @transform_12, window_bounds = array<i64: 1, 128>}, {pipeline_mode = #tpu.pipeline_mode<synchronous>, transform_indices = @transform_13, window_bounds = array<i64: 128, 32>}, {pipeline_mode = #tpu.pipeline_mode<synchronous>, transform_indices = @transform_14, window_bounds = array<i64: 1, 32>}, {transform_indices = @transform_15, window_bounds = array<i64: 1, 8, 32>}]} {
    %c0 = arith.constant 0 : index
    %c0_0 = arith.constant 0 : index
    %c0_1 = arith.constant 0 : index
    %0 = vector.load %arg2[%c0, %c0_0, %c0_1] : memref<1x16x32xf32, #tpu.memory_space<vmem>>, vector<1x16x32xf32>
    %1 = vector.shape_cast %0 : vector<1x16x32xf32> to vector<16x32xf32>
    %c0_2 = arith.constant 0 : index
    %c0_3 = arith.constant 0 : index
    %c0_4 = arith.constant 0 : index
    %2 = vector.load %arg3[%c0_2, %c0_3, %c0_4] : memref<1x8x32xf32, #tpu.memory_space<vmem>>, vector<1x8x32xf32>
    %3 = vector.shape_cast %2 : vector<1x8x32xf32> to vector<8x32xf32>
    %c0_5 = arith.constant 0 : index
    %c0_6 = arith.constant 0 : index
    %4 = vector.load %arg4[%c0_5, %c0_6] : memref<1x32xf32, #tpu.memory_space<vmem>>, vector<1x32xf32>
    %5 = vector.shape_cast %4 : vector<1x32xf32> to vector<32xf32>
    %c0_7 = arith.constant 0 : index
    %c0_8 = arith.constant 0 : index
    %6 = vector.load %arg5[%c0_7, %c0_8] : memref<1x32xf32, #tpu.memory_space<vmem>>, vector<1x32xf32>
    %7 = vector.shape_cast %6 : vector<1x32xf32> to vector<32xf32>
    %cst = arith.constant dense<0.000000e+00> : vector<16xf32>
    %8 = vector.multi_reduction <add>, %1, %cst [1] : vector<16x32xf32> to vector<16xf32>
    %9 = vector.shape_cast %8 : vector<16xf32> to vector<16x1xf32>
    %cst_9 = arith.constant 3.200000e+01 : f32
    %10 = vector.broadcast %cst_9 : f32 to vector<16x1xf32>
    %11 = arith.divf %9, %10 : vector<16x1xf32>
    %12 = vector.broadcast %11 : vector<16x1xf32> to vector<16x32xf32>
    %13 = arith.subf %1, %12 : vector<16x32xf32>
    %14 = arith.mulf %13, %13 : vector<16x32xf32>
    %cst_10 = arith.constant dense<0.000000e+00> : vector<16xf32>
    %15 = vector.multi_reduction <add>, %14, %cst_10 [1] : vector<16x32xf32> to vector<16xf32>
    %16 = vector.shape_cast %15 : vector<16xf32> to vector<16x1xf32>
    %cst_11 = arith.constant 3.200000e+01 : f32
    %17 = vector.broadcast %cst_11 : f32 to vector<16x1xf32>
    %18 = arith.divf %16, %17 : vector<16x1xf32>
    %19 = vector.broadcast %11 : vector<16x1xf32> to vector<16x32xf32>
    %20 = arith.subf %1, %19 : vector<16x32xf32>
    %cst_12 = arith.constant 9.99999974E-6 : f32
    %21 = vector.broadcast %cst_12 : f32 to vector<16x1xf32>
    %22 = arith.addf %18, %21 : vector<16x1xf32>
    %23 = math.rsqrt %22 : vector<16x1xf32>
    %24 = vector.broadcast %23 : vector<16x1xf32> to vector<16x32xf32>
    %25 = arith.mulf %20, %24 : vector<16x32xf32>
    %26 = vector.shape_cast %5 : vector<32xf32> to vector<1x32xf32>
    %27 = vector.broadcast %26 : vector<1x32xf32> to vector<16x32xf32>
    %28 = arith.mulf %25, %27 : vector<16x32xf32>
    %29 = vector.shape_cast %7 : vector<32xf32> to vector<1x32xf32>
    %30 = vector.broadcast %29 : vector<1x32xf32> to vector<16x32xf32>
    %31 = arith.addf %28, %30 : vector<16x32xf32>
    %32 = arith.truncf %31 : vector<16x32xf32> to vector<16x32xbf16>
    %c0_13 = arith.constant 0 : index
    %c0_14 = arith.constant 0 : index
    %33 = vector.load %arg4[%c0_13, %c0_14] : memref<1x32xf32, #tpu.memory_space<vmem>>, vector<1x32xf32>
    %34 = vector.shape_cast %33 : vector<1x32xf32> to vector<32xf32>
    %c0_15 = arith.constant 0 : index
    %c0_16 = arith.constant 0 : index
    %35 = vector.load %arg5[%c0_15, %c0_16] : memref<1x32xf32, #tpu.memory_space<vmem>>, vector<1x32xf32>
    %36 = vector.shape_cast %35 : vector<1x32xf32> to vector<32xf32>
    %cst_17 = arith.constant dense<0.000000e+00> : vector<8xf32>
    %37 = vector.multi_reduction <add>, %3, %cst_17 [1] : vector<8x32xf32> to vector<8xf32>
    %38 = vector.shape_cast %37 : vector<8xf32> to vector<8x1xf32>
    %cst_18 = arith.constant 3.200000e+01 : f32
    %39 = vector.broadcast %cst_18 : f32 to vector<8x1xf32>
    %40 = arith.divf %38, %39 : vector<8x1xf32>
    %41 = vector.broadcast %40 : vector<8x1xf32> to vector<8x32xf32>
    %42 = arith.subf %3, %41 : vector<8x32xf32>
    %43 = arith.mulf %42, %42 : vector<8x32xf32>
    %cst_19 = arith.constant dense<0.000000e+00> : vector<8xf32>
    %44 = vector.multi_reduction <add>, %43, %cst_19 [1] : vector<8x32xf32> to vector<8xf32>
    %45 = vector.shape_cast %44 : vector<8xf32> to vector<8x1xf32>
    %cst_20 = arith.constant 3.200000e+01 : f32
    %46 = vector.broadcast %cst_20 : f32 to vector<8x1xf32>
    %47 = arith.divf %45, %46 : vector<8x1xf32>
    %48 = vector.broadcast %40 : vector<8x1xf32> to vector<8x32xf32>
    %49 = arith.subf %3, %48 : vector<8x32xf32>
    %cst_21 = arith.constant 9.99999974E-6 : f32
    %50 = vector.broadcast %cst_21 : f32 to vector<8x1xf32>
    %51 = arith.addf %47, %50 : vector<8x1xf32>
    %52 = math.rsqrt %51 : vector<8x1xf32>
    %53 = vector.broadcast %52 : vector<8x1xf32> to vector<8x32xf32>
    %54 = arith.mulf %49, %53 : vector<8x32xf32>
    %55 = vector.shape_cast %34 : vector<32xf32> to vector<1x32xf32>
    %56 = vector.broadcast %55 : vector<1x32xf32> to vector<8x32xf32>
    %57 = arith.mulf %54, %56 : vector<8x32xf32>
    %58 = vector.shape_cast %36 : vector<32xf32> to vector<1x32xf32>
    %59 = vector.broadcast %58 : vector<1x32xf32> to vector<8x32xf32>
    %60 = arith.addf %57, %59 : vector<8x32xf32>
    %61 = arith.truncf %60 : vector<8x32xf32> to vector<8x32xbf16>
    %cst_22 = arith.constant 0.000000e+00 : f32
    %62 = vector.broadcast %cst_22 : f32 to vector<8x32xf32>
    %c0_23 = arith.constant 0 : index
    %c0_24 = arith.constant 0 : index
    %c0_25 = arith.constant 0 : index
    %63 = vector.load %arg6[%c0_23, %c0_24, %c0_25] : memref<4x32x8xbf16, #tpu.memory_space<vmem>>, vector<1x32x8xbf16>
    %64 = vector.shape_cast %63 : vector<1x32x8xbf16> to vector<32x8xbf16>
    %cst_26 = arith.constant dense<0.000000e+00> : vector<8x8xf32>
    %65 = tpu.matmul %61, %64, %cst_26 {dimension_numbers = #tpu.dot_dimension_numbers<[1], [0], [0], [1], [0, 0, 1, 1], [], []>} : vector<8x32xbf16>, vector<32x8xbf16>, vector<8x8xf32> -> vector<8x8xf32>
    %c0_27 = arith.constant 0 : index
    %c0_28 = arith.constant 0 : index
    %c0_29 = arith.constant 0 : index
    %66 = vector.load %arg7[%c0_27, %c0_28, %c0_29] : memref<4x32x8xbf16, #tpu.memory_space<vmem>>, vector<1x32x8xbf16>
    %67 = vector.shape_cast %66 : vector<1x32x8xbf16> to vector<32x8xbf16>
    %cst_30 = arith.constant dense<0.000000e+00> : vector<16x8xf32>
    %68 = tpu.matmul %32, %67, %cst_30 {dimension_numbers = #tpu.dot_dimension_numbers<[1], [0], [0], [1], [0, 0, 1, 1], [], []>} : vector<16x32xbf16>, vector<32x8xbf16>, vector<16x8xf32> -> vector<16x8xf32>
    %c0_31 = arith.constant 0 : index
    %c0_32 = arith.constant 0 : index
    %c0_33 = arith.constant 0 : index
    %69 = vector.load %arg8[%c0_31, %c0_32, %c0_33] : memref<4x32x8xbf16, #tpu.memory_space<vmem>>, vector<1x32x8xbf16>
    %70 = vector.shape_cast %69 : vector<1x32x8xbf16> to vector<32x8xbf16>
    %cst_34 = arith.constant dense<0.000000e+00> : vector<16x8xf32>
    %71 = tpu.matmul %32, %70, %cst_34 {dimension_numbers = #tpu.dot_dimension_numbers<[1], [0], [0], [1], [0, 0, 1, 1], [], []>} : vector<16x32xbf16>, vector<32x8xbf16>, vector<16x8xf32> -> vector<16x8xf32>
    %72 = arith.truncf %65 : vector<8x8xf32> to vector<8x8xbf16>
    %73 = arith.truncf %68 : vector<16x8xf32> to vector<16x8xbf16>
    %cst_35 = arith.constant dense<0.000000e+00> : vector<8x16xf32>
    %74 = tpu.matmul %72, %73, %cst_35 {dimension_numbers = #tpu.dot_dimension_numbers<[1], [1], [0], [0], [0, 0, 1, 0], [], []>} : vector<8x8xbf16>, vector<16x8xbf16>, vector<8x16xf32> -> vector<8x16xf32>
    %cst_36 = arith.constant dense<0xFF800000> : vector<8xf32>
    %75 = vector.multi_reduction <maximumf>, %74, %cst_36 [1] : vector<8x16xf32> to vector<8xf32>
    %76 = vector.shape_cast %75 : vector<8xf32> to vector<8x1xf32>
    %77 = vector.broadcast %76 : vector<8x1xf32> to vector<8x16xf32>
    %78 = arith.subf %74, %77 : vector<8x16xf32>
    %79 = math.exp %78 : vector<8x16xf32>
    %cst_37 = arith.constant dense<0.000000e+00> : vector<8xf32>
    %80 = vector.multi_reduction <add>, %79, %cst_37 [1] : vector<8x16xf32> to vector<8xf32>
    %81 = vector.shape_cast %80 : vector<8xf32> to vector<8x1xf32>
    %82 = tpu.reciprocal %81 {approx = true} : vector<8x1xf32> -> vector<8x1xf32>
    %83 = vector.broadcast %82 : vector<8x1xf32> to vector<8x16xf32>
    %84 = arith.mulf %79, %83 : vector<8x16xf32>
    %85 = arith.truncf %84 : vector<8x16xf32> to vector<8x16xbf16>
    %86 = arith.truncf %71 : vector<16x8xf32> to vector<16x8xbf16>
    %cst_38 = arith.constant dense<0.000000e+00> : vector<8x8xf32>
    %87 = tpu.matmul %85, %86, %cst_38 {dimension_numbers = #tpu.dot_dimension_numbers<[1], [0], [0], [1], [0, 0, 1, 1], [], []>} : vector<8x16xbf16>, vector<16x8xbf16>, vector<8x8xf32> -> vector<8x8xf32>
    %88 = arith.truncf %87 : vector<8x8xf32> to vector<8x8xbf16>
    %c0_39 = arith.constant 0 : index
    %c0_40 = arith.constant 0 : index
    %c0_41 = arith.constant 0 : index
    %89 = vector.load %arg9[%c0_39, %c0_40, %c0_41] : memref<4x8x32xbf16, #tpu.memory_space<vmem>>, vector<1x8x32xbf16>
    %90 = vector.shape_cast %89 : vector<1x8x32xbf16> to vector<8x32xbf16>
    %cst_42 = arith.constant dense<0.000000e+00> : vector<8x32xf32>
    %91 = tpu.matmul %88, %90, %cst_42 {dimension_numbers = #tpu.dot_dimension_numbers<[1], [0], [0], [1], [0, 0, 1, 1], [], []>} : vector<8x8xbf16>, vector<8x32xbf16>, vector<8x32xf32> -> vector<8x32xf32>
    %92 = arith.addf %62, %91 : vector<8x32xf32>
    %c1 = arith.constant 1 : index
    %c0_43 = arith.constant 0 : index
    %c0_44 = arith.constant 0 : index
    %93 = vector.load %arg6[%c1, %c0_43, %c0_44] : memref<4x32x8xbf16, #tpu.memory_space<vmem>>, vector<1x32x8xbf16>
    %94 = vector.shape_cast %93 : vector<1x32x8xbf16> to vector<32x8xbf16>
    %cst_45 = arith.constant dense<0.000000e+00> : vector<8x8xf32>
    %95 = tpu.matmul %61, %94, %cst_45 {dimension_numbers = #tpu.dot_dimension_numbers<[1], [0], [0], [1], [0, 0, 1, 1], [], []>} : vector<8x32xbf16>, vector<32x8xbf16>, vector<8x8xf32> -> vector<8x8xf32>
    %c1_46 = arith.constant 1 : index
    %c0_47 = arith.constant 0 : index
    %c0_48 = arith.constant 0 : index
    %96 = vector.load %arg7[%c1_46, %c0_47, %c0_48] : memref<4x32x8xbf16, #tpu.memory_space<vmem>>, vector<1x32x8xbf16>
    %97 = vector.shape_cast %96 : vector<1x32x8xbf16> to vector<32x8xbf16>
    %cst_49 = arith.constant dense<0.000000e+00> : vector<16x8xf32>
    %98 = tpu.matmul %32, %97, %cst_49 {dimension_numbers = #tpu.dot_dimension_numbers<[1], [0], [0], [1], [0, 0, 1, 1], [], []>} : vector<16x32xbf16>, vector<32x8xbf16>, vector<16x8xf32> -> vector<16x8xf32>
    %c1_50 = arith.constant 1 : index
    %c0_51 = arith.constant 0 : index
    %c0_52 = arith.constant 0 : index
    %99 = vector.load %arg8[%c1_50, %c0_51, %c0_52] : memref<4x32x8xbf16, #tpu.memory_space<vmem>>, vector<1x32x8xbf16>
    %100 = vector.shape_cast %99 : vector<1x32x8xbf16> to vector<32x8xbf16>
    %cst_53 = arith.constant dense<0.000000e+00> : vector<16x8xf32>
    %101 = tpu.matmul %32, %100, %cst_53 {dimension_numbers = #tpu.dot_dimension_numbers<[1], [0], [0], [1], [0, 0, 1, 1], [], []>} : vector<16x32xbf16>, vector<32x8xbf16>, vector<16x8xf32> -> vector<16x8xf32>
    %102 = arith.truncf %95 : vector<8x8xf32> to vector<8x8xbf16>
    %103 = arith.truncf %98 : vector<16x8xf32> to vector<16x8xbf16>
    %cst_54 = arith.constant dense<0.000000e+00> : vector<8x16xf32>
    %104 = tpu.matmul %102, %103, %cst_54 {dimension_numbers = #tpu.dot_dimension_numbers<[1], [1], [0], [0], [0, 0, 1, 0], [], []>} : vector<8x8xbf16>, vector<16x8xbf16>, vector<8x16xf32> -> vector<8x16xf32>
    %cst_55 = arith.constant dense<0xFF800000> : vector<8xf32>
    %105 = vector.multi_reduction <maximumf>, %104, %cst_55 [1] : vector<8x16xf32> to vector<8xf32>
    %106 = vector.shape_cast %105 : vector<8xf32> to vector<8x1xf32>
    %107 = vector.broadcast %106 : vector<8x1xf32> to vector<8x16xf32>
    %108 = arith.subf %104, %107 : vector<8x16xf32>
    %109 = math.exp %108 : vector<8x16xf32>
    %cst_56 = arith.constant dense<0.000000e+00> : vector<8xf32>
    %110 = vector.multi_reduction <add>, %109, %cst_56 [1] : vector<8x16xf32> to vector<8xf32>
    %111 = vector.shape_cast %110 : vector<8xf32> to vector<8x1xf32>
    %112 = tpu.reciprocal %111 {approx = true} : vector<8x1xf32> -> vector<8x1xf32>
    %113 = vector.broadcast %112 : vector<8x1xf32> to vector<8x16xf32>
    %114 = arith.mulf %109, %113 : vector<8x16xf32>
    %115 = arith.truncf %114 : vector<8x16xf32> to vector<8x16xbf16>
    %116 = arith.truncf %101 : vector<16x8xf32> to vector<16x8xbf16>
    %cst_57 = arith.constant dense<0.000000e+00> : vector<8x8xf32>
    %117 = tpu.matmul %115, %116, %cst_57 {dimension_numbers = #tpu.dot_dimension_numbers<[1], [0], [0], [1], [0, 0, 1, 1], [], []>} : vector<8x16xbf16>, vector<16x8xbf16>, vector<8x8xf32> -> vector<8x8xf32>
    %118 = arith.truncf %117 : vector<8x8xf32> to vector<8x8xbf16>
    %c1_58 = arith.constant 1 : index
    %c0_59 = arith.constant 0 : index
    %c0_60 = arith.constant 0 : index
    %119 = vector.load %arg9[%c1_58, %c0_59, %c0_60] : memref<4x8x32xbf16, #tpu.memory_space<vmem>>, vector<1x8x32xbf16>
    %120 = vector.shape_cast %119 : vector<1x8x32xbf16> to vector<8x32xbf16>
    %cst_61 = arith.constant dense<0.000000e+00> : vector<8x32xf32>
    %121 = tpu.matmul %118, %120, %cst_61 {dimension_numbers = #tpu.dot_dimension_numbers<[1], [0], [0], [1], [0, 0, 1, 1], [], []>} : vector<8x8xbf16>, vector<8x32xbf16>, vector<8x32xf32> -> vector<8x32xf32>
    %122 = arith.addf %92, %121 : vector<8x32xf32>
    %c2 = arith.constant 2 : index
    %c0_62 = arith.constant 0 : index
    %c0_63 = arith.constant 0 : index
    %123 = vector.load %arg6[%c2, %c0_62, %c0_63] : memref<4x32x8xbf16, #tpu.memory_space<vmem>>, vector<1x32x8xbf16>
    %124 = vector.shape_cast %123 : vector<1x32x8xbf16> to vector<32x8xbf16>
    %cst_64 = arith.constant dense<0.000000e+00> : vector<8x8xf32>
    %125 = tpu.matmul %61, %124, %cst_64 {dimension_numbers = #tpu.dot_dimension_numbers<[1], [0], [0], [1], [0, 0, 1, 1], [], []>} : vector<8x32xbf16>, vector<32x8xbf16>, vector<8x8xf32> -> vector<8x8xf32>
    %c2_65 = arith.constant 2 : index
    %c0_66 = arith.constant 0 : index
    %c0_67 = arith.constant 0 : index
    %126 = vector.load %arg7[%c2_65, %c0_66, %c0_67] : memref<4x32x8xbf16, #tpu.memory_space<vmem>>, vector<1x32x8xbf16>
    %127 = vector.shape_cast %126 : vector<1x32x8xbf16> to vector<32x8xbf16>
    %cst_68 = arith.constant dense<0.000000e+00> : vector<16x8xf32>
    %128 = tpu.matmul %32, %127, %cst_68 {dimension_numbers = #tpu.dot_dimension_numbers<[1], [0], [0], [1], [0, 0, 1, 1], [], []>} : vector<16x32xbf16>, vector<32x8xbf16>, vector<16x8xf32> -> vector<16x8xf32>
    %c2_69 = arith.constant 2 : index
    %c0_70 = arith.constant 0 : index
    %c0_71 = arith.constant 0 : index
    %129 = vector.load %arg8[%c2_69, %c0_70, %c0_71] : memref<4x32x8xbf16, #tpu.memory_space<vmem>>, vector<1x32x8xbf16>
    %130 = vector.shape_cast %129 : vector<1x32x8xbf16> to vector<32x8xbf16>
    %cst_72 = arith.constant dense<0.000000e+00> : vector<16x8xf32>
    %131 = tpu.matmul %32, %130, %cst_72 {dimension_numbers = #tpu.dot_dimension_numbers<[1], [0], [0], [1], [0, 0, 1, 1], [], []>} : vector<16x32xbf16>, vector<32x8xbf16>, vector<16x8xf32> -> vector<16x8xf32>
    %132 = arith.truncf %125 : vector<8x8xf32> to vector<8x8xbf16>
    %133 = arith.truncf %128 : vector<16x8xf32> to vector<16x8xbf16>
    %cst_73 = arith.constant dense<0.000000e+00> : vector<8x16xf32>
    %134 = tpu.matmul %132, %133, %cst_73 {dimension_numbers = #tpu.dot_dimension_numbers<[1], [1], [0], [0], [0, 0, 1, 0], [], []>} : vector<8x8xbf16>, vector<16x8xbf16>, vector<8x16xf32> -> vector<8x16xf32>
    %cst_74 = arith.constant dense<0xFF800000> : vector<8xf32>
    %135 = vector.multi_reduction <maximumf>, %134, %cst_74 [1] : vector<8x16xf32> to vector<8xf32>
    %136 = vector.shape_cast %135 : vector<8xf32> to vector<8x1xf32>
    %137 = vector.broadcast %136 : vector<8x1xf32> to vector<8x16xf32>
    %138 = arith.subf %134, %137 : vector<8x16xf32>
    %139 = math.exp %138 : vector<8x16xf32>
    %cst_75 = arith.constant dense<0.000000e+00> : vector<8xf32>
    %140 = vector.multi_reduction <add>, %139, %cst_75 [1] : vector<8x16xf32> to vector<8xf32>
    %141 = vector.shape_cast %140 : vector<8xf32> to vector<8x1xf32>
    %142 = tpu.reciprocal %141 {approx = true} : vector<8x1xf32> -> vector<8x1xf32>
    %143 = vector.broadcast %142 : vector<8x1xf32> to vector<8x16xf32>
    %144 = arith.mulf %139, %143 : vector<8x16xf32>
    %145 = arith.truncf %144 : vector<8x16xf32> to vector<8x16xbf16>
    %146 = arith.truncf %131 : vector<16x8xf32> to vector<16x8xbf16>
    %cst_76 = arith.constant dense<0.000000e+00> : vector<8x8xf32>
    %147 = tpu.matmul %145, %146, %cst_76 {dimension_numbers = #tpu.dot_dimension_numbers<[1], [0], [0], [1], [0, 0, 1, 1], [], []>} : vector<8x16xbf16>, vector<16x8xbf16>, vector<8x8xf32> -> vector<8x8xf32>
    %148 = arith.truncf %147 : vector<8x8xf32> to vector<8x8xbf16>
    %c2_77 = arith.constant 2 : index
    %c0_78 = arith.constant 0 : index
    %c0_79 = arith.constant 0 : index
    %149 = vector.load %arg9[%c2_77, %c0_78, %c0_79] : memref<4x8x32xbf16, #tpu.memory_space<vmem>>, vector<1x8x32xbf16>
    %150 = vector.shape_cast %149 : vector<1x8x32xbf16> to vector<8x32xbf16>
    %cst_80 = arith.constant dense<0.000000e+00> : vector<8x32xf32>
    %151 = tpu.matmul %148, %150, %cst_80 {dimension_numbers = #tpu.dot_dimension_numbers<[1], [0], [0], [1], [0, 0, 1, 1], [], []>} : vector<8x8xbf16>, vector<8x32xbf16>, vector<8x32xf32> -> vector<8x32xf32>
    %152 = arith.addf %122, %151 : vector<8x32xf32>
    %c3 = arith.constant 3 : index
    %c0_81 = arith.constant 0 : index
    %c0_82 = arith.constant 0 : index
    %153 = vector.load %arg6[%c3, %c0_81, %c0_82] : memref<4x32x8xbf16, #tpu.memory_space<vmem>>, vector<1x32x8xbf16>
    %154 = vector.shape_cast %153 : vector<1x32x8xbf16> to vector<32x8xbf16>
    %cst_83 = arith.constant dense<0.000000e+00> : vector<8x8xf32>
    %155 = tpu.matmul %61, %154, %cst_83 {dimension_numbers = #tpu.dot_dimension_numbers<[1], [0], [0], [1], [0, 0, 1, 1], [], []>} : vector<8x32xbf16>, vector<32x8xbf16>, vector<8x8xf32> -> vector<8x8xf32>
    %c3_84 = arith.constant 3 : index
    %c0_85 = arith.constant 0 : index
    %c0_86 = arith.constant 0 : index
    %156 = vector.load %arg7[%c3_84, %c0_85, %c0_86] : memref<4x32x8xbf16, #tpu.memory_space<vmem>>, vector<1x32x8xbf16>
    %157 = vector.shape_cast %156 : vector<1x32x8xbf16> to vector<32x8xbf16>
    %cst_87 = arith.constant dense<0.000000e+00> : vector<16x8xf32>
    %158 = tpu.matmul %32, %157, %cst_87 {dimension_numbers = #tpu.dot_dimension_numbers<[1], [0], [0], [1], [0, 0, 1, 1], [], []>} : vector<16x32xbf16>, vector<32x8xbf16>, vector<16x8xf32> -> vector<16x8xf32>
    %c3_88 = arith.constant 3 : index
    %c0_89 = arith.constant 0 : index
    %c0_90 = arith.constant 0 : index
    %159 = vector.load %arg8[%c3_88, %c0_89, %c0_90] : memref<4x32x8xbf16, #tpu.memory_space<vmem>>, vector<1x32x8xbf16>
    %160 = vector.shape_cast %159 : vector<1x32x8xbf16> to vector<32x8xbf16>
    %cst_91 = arith.constant dense<0.000000e+00> : vector<16x8xf32>
    %161 = tpu.matmul %32, %160, %cst_91 {dimension_numbers = #tpu.dot_dimension_numbers<[1], [0], [0], [1], [0, 0, 1, 1], [], []>} : vector<16x32xbf16>, vector<32x8xbf16>, vector<16x8xf32> -> vector<16x8xf32>
    %162 = arith.truncf %155 : vector<8x8xf32> to vector<8x8xbf16>
    %163 = arith.truncf %158 : vector<16x8xf32> to vector<16x8xbf16>
    %cst_92 = arith.constant dense<0.000000e+00> : vector<8x16xf32>
    %164 = tpu.matmul %162, %163, %cst_92 {dimension_numbers = #tpu.dot_dimension_numbers<[1], [1], [0], [0], [0, 0, 1, 0], [], []>} : vector<8x8xbf16>, vector<16x8xbf16>, vector<8x16xf32> -> vector<8x16xf32>
    %cst_93 = arith.constant dense<0xFF800000> : vector<8xf32>
    %165 = vector.multi_reduction <maximumf>, %164, %cst_93 [1] : vector<8x16xf32> to vector<8xf32>
    %166 = vector.shape_cast %165 : vector<8xf32> to vector<8x1xf32>
    %167 = vector.broadcast %166 : vector<8x1xf32> to vector<8x16xf32>
    %168 = arith.subf %164, %167 : vector<8x16xf32>
    %169 = math.exp %168 : vector<8x16xf32>
    %cst_94 = arith.constant dense<0.000000e+00> : vector<8xf32>
    %170 = vector.multi_reduction <add>, %169, %cst_94 [1] : vector<8x16xf32> to vector<8xf32>
    %171 = vector.shape_cast %170 : vector<8xf32> to vector<8x1xf32>
    %172 = tpu.reciprocal %171 {approx = true} : vector<8x1xf32> -> vector<8x1xf32>
    %173 = vector.broadcast %172 : vector<8x1xf32> to vector<8x16xf32>
    %174 = arith.mulf %169, %173 : vector<8x16xf32>
    %175 = arith.truncf %174 : vector<8x16xf32> to vector<8x16xbf16>
    %176 = arith.truncf %161 : vector<16x8xf32> to vector<16x8xbf16>
    %cst_95 = arith.constant dense<0.000000e+00> : vector<8x8xf32>
    %177 = tpu.matmul %175, %176, %cst_95 {dimension_numbers = #tpu.dot_dimension_numbers<[1], [0], [0], [1], [0, 0, 1, 1], [], []>} : vector<8x16xbf16>, vector<16x8xbf16>, vector<8x8xf32> -> vector<8x8xf32>
    %178 = arith.truncf %177 : vector<8x8xf32> to vector<8x8xbf16>
    %c3_96 = arith.constant 3 : index
    %c0_97 = arith.constant 0 : index
    %c0_98 = arith.constant 0 : index
    %179 = vector.load %arg9[%c3_96, %c0_97, %c0_98] : memref<4x8x32xbf16, #tpu.memory_space<vmem>>, vector<1x8x32xbf16>
    %180 = vector.shape_cast %179 : vector<1x8x32xbf16> to vector<8x32xbf16>
    %cst_99 = arith.constant dense<0.000000e+00> : vector<8x32xf32>
    %181 = tpu.matmul %178, %180, %cst_99 {dimension_numbers = #tpu.dot_dimension_numbers<[1], [0], [0], [1], [0, 0, 1, 1], [], []>} : vector<8x8xbf16>, vector<8x32xbf16>, vector<8x32xf32> -> vector<8x32xf32>
    %182 = arith.addf %152, %181 : vector<8x32xf32>
    %c0_100 = arith.constant 0 : index
    %c0_101 = arith.constant 0 : index
    %183 = vector.load %arg10[%c0_100, %c0_101] : memref<1x32xf32, #tpu.memory_space<vmem>>, vector<1x32xf32>
    %184 = vector.shape_cast %183 : vector<1x32xf32> to vector<32xf32>
    %185 = vector.shape_cast %184 : vector<32xf32> to vector<1x32xf32>
    %186 = vector.broadcast %185 : vector<1x32xf32> to vector<8x32xf32>
    %187 = arith.addf %182, %186 : vector<8x32xf32>
    %188 = arith.addf %3, %187 : vector<8x32xf32>
    %c0_102 = arith.constant 0 : index
    %c0_103 = arith.constant 0 : index
    %189 = vector.load %arg11[%c0_102, %c0_103] : memref<1x32xf32, #tpu.memory_space<vmem>>, vector<1x32xf32>
    %190 = vector.shape_cast %189 : vector<1x32xf32> to vector<32xf32>
    %c0_104 = arith.constant 0 : index
    %c0_105 = arith.constant 0 : index
    %191 = vector.load %arg12[%c0_104, %c0_105] : memref<1x32xf32, #tpu.memory_space<vmem>>, vector<1x32xf32>
    %192 = vector.shape_cast %191 : vector<1x32xf32> to vector<32xf32>
    %cst_106 = arith.constant dense<0.000000e+00> : vector<8xf32>
    %193 = vector.multi_reduction <add>, %188, %cst_106 [1] : vector<8x32xf32> to vector<8xf32>
    %194 = vector.shape_cast %193 : vector<8xf32> to vector<8x1xf32>
    %cst_107 = arith.constant 3.200000e+01 : f32
    %195 = vector.broadcast %cst_107 : f32 to vector<8x1xf32>
    %196 = arith.divf %194, %195 : vector<8x1xf32>
    %197 = vector.broadcast %196 : vector<8x1xf32> to vector<8x32xf32>
    %198 = arith.subf %188, %197 : vector<8x32xf32>
    %199 = arith.mulf %198, %198 : vector<8x32xf32>
    %cst_108 = arith.constant dense<0.000000e+00> : vector<8xf32>
    %200 = vector.multi_reduction <add>, %199, %cst_108 [1] : vector<8x32xf32> to vector<8xf32>
    %201 = vector.shape_cast %200 : vector<8xf32> to vector<8x1xf32>
    %cst_109 = arith.constant 3.200000e+01 : f32
    %202 = vector.broadcast %cst_109 : f32 to vector<8x1xf32>
    %203 = arith.divf %201, %202 : vector<8x1xf32>
    %204 = vector.broadcast %196 : vector<8x1xf32> to vector<8x32xf32>
    %205 = arith.subf %188, %204 : vector<8x32xf32>
    %cst_110 = arith.constant 9.99999974E-6 : f32
    %206 = vector.broadcast %cst_110 : f32 to vector<8x1xf32>
    %207 = arith.addf %203, %206 : vector<8x1xf32>
    %208 = math.rsqrt %207 : vector<8x1xf32>
    %209 = vector.broadcast %208 : vector<8x1xf32> to vector<8x32xf32>
    %210 = arith.mulf %205, %209 : vector<8x32xf32>
    %211 = vector.shape_cast %190 : vector<32xf32> to vector<1x32xf32>
    %212 = vector.broadcast %211 : vector<1x32xf32> to vector<8x32xf32>
    %213 = arith.mulf %210, %212 : vector<8x32xf32>
    %214 = vector.shape_cast %192 : vector<32xf32> to vector<1x32xf32>
    %215 = vector.broadcast %214 : vector<1x32xf32> to vector<8x32xf32>
    %216 = arith.addf %213, %215 : vector<8x32xf32>
    %217 = arith.truncf %216 : vector<8x32xf32> to vector<8x32xbf16>
    %c0_111 = arith.constant 0 : index
    %c0_112 = arith.constant 0 : index
    %218 = vector.load %arg13[%c0_111, %c0_112] : memref<32x128xbf16, #tpu.memory_space<vmem>>, vector<32x128xbf16>
    %cst_113 = arith.constant dense<0.000000e+00> : vector<8x128xf32>
    %219 = tpu.matmul %217, %218, %cst_113 {dimension_numbers = #tpu.dot_dimension_numbers<[1], [0], [0], [1], [0, 0, 1, 1], [], []>} : vector<8x32xbf16>, vector<32x128xbf16>, vector<8x128xf32> -> vector<8x128xf32>
    %c0_114 = arith.constant 0 : index
    %c0_115 = arith.constant 0 : index
    %220 = vector.load %arg14[%c0_114, %c0_115] : memref<1x128xf32, #tpu.memory_space<vmem>>, vector<1x128xf32>
    %221 = vector.shape_cast %220 : vector<1x128xf32> to vector<128xf32>
    %222 = vector.shape_cast %221 : vector<128xf32> to vector<1x128xf32>
    %223 = vector.broadcast %222 : vector<1x128xf32> to vector<8x128xf32>
    %224 = arith.addf %219, %223 : vector<8x128xf32>
    %225 = arith.mulf %224, %224 : vector<8x128xf32>
    %226 = arith.mulf %224, %225 : vector<8x128xf32>
    %cst_116 = arith.constant 4.471500e-02 : f32
    %227 = vector.broadcast %cst_116 : f32 to vector<8x128xf32>
    %228 = arith.mulf %227, %226 : vector<8x128xf32>
    %229 = arith.addf %224, %228 : vector<8x128xf32>
    %cst_117 = arith.constant 0.797884583 : f32
    %230 = vector.broadcast %cst_117 : f32 to vector<8x128xf32>
    %231 = arith.mulf %230, %229 : vector<8x128xf32>
    %232 = math.tanh %231 : vector<8x128xf32>
    %cst_118 = arith.constant 1.000000e+00 : f32
    %233 = vector.broadcast %cst_118 : f32 to vector<8x128xf32>
    %234 = arith.addf %233, %232 : vector<8x128xf32>
    %cst_119 = arith.constant 5.000000e-01 : f32
    %235 = vector.broadcast %cst_119 : f32 to vector<8x128xf32>
    %236 = arith.mulf %235, %234 : vector<8x128xf32>
    %237 = arith.mulf %224, %236 : vector<8x128xf32>
    %238 = arith.truncf %237 : vector<8x128xf32> to vector<8x128xbf16>
    %c0_120 = arith.constant 0 : index
    %c0_121 = arith.constant 0 : index
    %239 = vector.load %arg15[%c0_120, %c0_121] : memref<128x32xbf16, #tpu.memory_space<vmem>>, vector<128x32xbf16>
    %cst_122 = arith.constant dense<0.000000e+00> : vector<8x32xf32>
    %240 = tpu.matmul %238, %239, %cst_122 {dimension_numbers = #tpu.dot_dimension_numbers<[1], [0], [0], [1], [0, 0, 1, 1], [], []>} : vector<8x128xbf16>, vector<128x32xbf16>, vector<8x32xf32> -> vector<8x32xf32>
    %c0_123 = arith.constant 0 : index
    %c0_124 = arith.constant 0 : index
    %241 = vector.load %arg16[%c0_123, %c0_124] : memref<1x32xf32, #tpu.memory_space<vmem>>, vector<1x32xf32>
    %242 = vector.shape_cast %241 : vector<1x32xf32> to vector<32xf32>
    %243 = vector.shape_cast %242 : vector<32xf32> to vector<1x32xf32>
    %244 = vector.broadcast %243 : vector<1x32xf32> to vector<8x32xf32>
    %245 = arith.addf %240, %244 : vector<8x32xf32>
    %246 = arith.addf %188, %245 : vector<8x32xf32>
    %c0_125 = arith.constant 0 : index
    %c0_126 = arith.constant 0 : index
    %c0_127 = arith.constant 0 : index
    %247 = vector.load %arg17[%c0_125, %c0_126, %c0_127] : memref<1x8x32xf32, #tpu.memory_space<vmem>>, vector<1x8x32xf32>
    %248 = vector.shape_cast %247 : vector<1x8x32xf32> to vector<8x32xf32>
    %249 = vector.shape_cast %246 : vector<8x32xf32> to vector<1x8x32xf32>
    tpu.vector_store %arg17[%c0_125, %c0_126, %c0_127], %249 {strides = array<i32>} : memref<1x8x32xf32, #tpu.memory_space<vmem>>, vector<1x8x32xf32>,
    return
  }
  func.func @transform_0(%arg0: i32, %arg1: i32) -> (i32, i32, i32) {
    %c0_i32 = arith.constant 0 : i32
    %c0_i32_0 = arith.constant 0 : i32
    %c0_i32_1 = arith.constant 0 : i32
    return %arg0, %c0_i32, %c0_i32_0 : i32, i32, i32
  }
  func.func @transform_1(%arg0: i32, %arg1: i32) -> (i32, i32, i32) {
    %c0_i32 = arith.constant 0 : i32
    %c0_i32_0 = arith.constant 0 : i32
    return %arg0, %arg1, %c0_i32 : i32, i32, i32
  }
  func.func @transform_2(%arg0: i32, %arg1: i32) -> (i32, i32) {
    %c0_i32 = arith.constant 0 : i32
    %c0_i32_0 = arith.constant 0 : i32
    %c0_i32_1 = arith.constant 0 : i32
    return %c0_i32, %c0_i32_0 : i32, i32
  }
  func.func @transform_3(%arg0: i32, %arg1: i32) -> (i32, i32) {
    %c0_i32 = arith.constant 0 : i32
    %c0_i32_0 = arith.constant 0 : i32
    %c0_i32_1 = arith.constant 0 : i32
    return %c0_i32, %c0_i32_0 : i32, i32
  }
  func.func @transform_4(%arg0: i32, %arg1: i32) -> (i32, i32, i32) {
    %c0_i32 = arith.constant 0 : i32
    %c0_i32_0 = arith.constant 0 : i32
    %c0_i32_1 = arith.constant 0 : i32
    %c0_i32_2 = arith.constant 0 : i32
    return %c0_i32, %c0_i32_0, %c0_i32_1 : i32, i32, i32
  }
  func.func @transform_5(%arg0: i32, %arg1: i32) -> (i32, i32, i32) {
    %c0_i32 = arith.constant 0 : i32
    %c0_i32_0 = arith.constant 0 : i32
    %c0_i32_1 = arith.constant 0 : i32
    %c0_i32_2 = arith.constant 0 : i32
    return %c0_i32, %c0_i32_0, %c0_i32_1 : i32, i32, i32
  }
  func.func @transform_6(%arg0: i32, %arg1: i32) -> (i32, i32, i32) {
    %c0_i32 = arith.constant 0 : i32
    %c0_i32_0 = arith.constant 0 : i32
    %c0_i32_1 = arith.constant 0 : i32
    %c0_i32_2 = arith.constant 0 : i32
    return %c0_i32, %c0_i32_0, %c0_i32_1 : i32, i32, i32
  }
  func.func @transform_7(%arg0: i32, %arg1: i32) -> (i32, i32, i32) {
    %c0_i32 = arith.constant 0 : i32
    %c0_i32_0 = arith.constant 0 : i32
    %c0_i32_1 = arith.constant 0 : i32
    %c0_i32_2 = arith.constant 0 : i32
    return %c0_i32, %c0_i32_0, %c0_i32_1 : i32, i32, i32
  }
  func.func @transform_8(%arg0: i32, %arg1: i32) -> (i32, i32) {
    %c0_i32 = arith.constant 0 : i32
    %c0_i32_0 = arith.constant 0 : i32
    %c0_i32_1 = arith.constant 0 : i32
    return %c0_i32, %c0_i32_0 : i32, i32
  }
  func.func @transform_9(%arg0: i32, %arg1: i32) -> (i32, i32) {
    %c0_i32 = arith.constant 0 : i32
    %c0_i32_0 = arith.constant 0 : i32
    %c0_i32_1 = arith.constant 0 : i32
    return %c0_i32, %c0_i32_0 : i32, i32
  }
  func.func @transform_10(%arg0: i32, %arg1: i32) -> (i32, i32) {
    %c0_i32 = arith.constant 0 : i32
    %c0_i32_0 = arith.constant 0 : i32
    %c0_i32_1 = arith.constant 0 : i32
    return %c0_i32, %c0_i32_0 : i32, i32
  }
  func.func @transform_11(%arg0: i32, %arg1: i32) -> (i32, i32) {
    %c0_i32 = arith.constant 0 : i32
    %c0_i32_0 = arith.constant 0 : i32
    %c0_i32_1 = arith.constant 0 : i32
    return %c0_i32, %c0_i32_0 : i32, i32
  }
  func.func @transform_12(%arg0: i32, %arg1: i32) -> (i32, i32) {
    %c0_i32 = arith.constant 0 : i32
    %c0_i32_0 = arith.constant 0 : i32
    %c0_i32_1 = arith.constant 0 : i32
    return %c0_i32, %c0_i32_0 : i32, i32
  }
  func.func @transform_13(%arg0: i32, %arg1: i32) -> (i32, i32) {
    %c0_i32 = arith.constant 0 : i32
    %c0_i32_0 = arith.constant 0 : i32
    %c0_i32_1 = arith.constant 0 : i32
    return %c0_i32, %c0_i32_0 : i32, i32
  }
  func.func @transform_14(%arg0: i32, %arg1: i32) -> (i32, i32) {
    %c0_i32 = arith.constant 0 : i32
    %c0_i32_0 = arith.constant 0 : i32
    %c0_i32_1 = arith.constant 0 : i32
    return %c0_i32, %c0_i32_0 : i32, i32
  }
  func.func @transform_15(%arg0: i32, %arg1: i32) -> (i32, i32, i32) {
    %c0_i32 = arith.constant 0 : i32
    %c0_i32_0 = arith.constant 0 : i32
    return %arg0, %arg1, %c0_i32 : i32, i32, i32
  }
}

</mosaic_0001>

<llo_original>
// kernel: tpu_custom_call.1
$region0: #{tpu_custom_call.1}
  #allocation0 [shape = 'u32[]', space=smem, size = 0x4, offset = 0x4, fixed_abs, tag = 'smem constant byte address 0x4 - core index']
  #allocation1 [shape = 'u32[144,128]{1,0:T(1,128)}', space=vmem, size = 0x12000, scoped, tag = 'internal scratch']
  %s0 = inlined_call_operand.vmem [shape: f32[2,16,32], index: 0, kind: input, shape index: {}]
  %s1 = inlined_call_operand.vmem [shape: f32[2,16,32], index: 1, kind: input, shape index: {}]
  %s2 = inlined_call_operand.vmem [shape: f32[1,32], index: 2, kind: input, shape index: {}]
  %s3 = inlined_call_operand.vmem [shape: f32[1,32], index: 3, kind: input, shape index: {}]
  %s4 = inlined_call_operand.vmem [shape: bf16[4,32,8], index: 4, kind: input, shape index: {}]
  %s5 = inlined_call_operand.vmem [shape: bf16[4,32,8], index: 5, kind: input, shape index: {}]
  %s6 = inlined_call_operand.vmem [shape: bf16[4,32,8], index: 6, kind: input, shape index: {}]
  %s7 = inlined_call_operand.vmem [shape: bf16[4,8,32], index: 7, kind: input, shape index: {}]
  %s8 = inlined_call_operand.vmem [shape: f32[1,32], index: 8, kind: input, shape index: {}]
  %s9 = inlined_call_operand.vmem [shape: f32[1,32], index: 9, kind: input, shape index: {}]
  %s10 = inlined_call_operand.vmem [shape: f32[1,32], index: 10, kind: input, shape index: {}]
  %s11 = inlined_call_operand.vmem [shape: bf16[32,128], index: 11, kind: input, shape index: {}]
  %s12 = inlined_call_operand.vmem [shape: f32[1,128], index: 12, kind: input, shape index: {}]
  %s13 = inlined_call_operand.vmem [shape: bf16[128,32], index: 13, kind: input, shape index: {}]
  %s14 = inlined_call_operand.vmem [shape: f32[1,32], index: 14, kind: input, shape index: {}]
  %s15 = inlined_call_operand.hbm [shape: f32[2,16,32], index: 15, kind: output, shape index: {}]
  %s16 = sld [smem:[#allocation0]]
  $region93: #{tpu_custom_call.1} parent=0
    _
  %s18 = ssub.s32 1, %s16
  %s19 = scalar_select 0, %s18, %s16
  $region1: #{tpu_custom_call.1} parent=0
    #allocation2 [shape = 'u8[8192]{0}', space=vmem, size = 0x2000, scoped, tag = 'output window, operand 0']
    #allocation3 [shape = 's32[2]{0}', space=sflag, size = 0x8, scoped, tag = 'scoped memory for tpu_custom_call.1']
    %20 = vsyncpa [#allocation3], 0
    %s21 = scalar_lea.sflag [#allocation3], 1
    %22 = vsyncpa %s21, 0
    loop: start=0, step=1, limit=6
    $region2: #{tpu_custom_call.1} parent=1 // loop_pre_header
      _
    $region3: #{tpu_custom_call.1} parent=1 // loop_header
      %s24 = sphi 0, %s28
      %p25 = scmp.ge.s32.totalorder %s24, 6
      %s31 = sphi 0, %s43
      %s32 = sphi 0, %s39
      %s33 = sphi 0, %s31
      %s34 = sphi 0, %s32
      %s35 = sphi 0, %s33
      %s36 = sphi 0, %s34
      %s46 = sphi 0, %s48
      %s49 = sphi 0, %s46
      %s50 = sphi 0, %s49
      %s66 = sphi 0, %s50
      %s74 = sphi 0, %s76
      %s77 = sphi 0, %s74
      %s78 = sphi 0, %s77
      %s94 = sphi 0, %s78
      %s98 = sphi 0, %s98
      %s100 = sphi 0, %s98
      %s101 = sphi 0, %s100
      %s115 = sphi 0, %s101
      %s119 = sphi 0, %s119
      %s121 = sphi 0, %s119
      %s122 = sphi 0, %s121
      %s136 = sphi 0, %s122
      %s140 = sphi 0, %s140
      %s142 = sphi 0, %s140
      %s143 = sphi 0, %s142
      %s157 = sphi 0, %s143
      %s161 = sphi 0, %s161
      %s163 = sphi 0, %s161
      %s164 = sphi 0, %s163
      %s178 = sphi 0, %s164
      %s182 = sphi 0, %s182
      %s184 = sphi 0, %s182
      %s185 = sphi 0, %s184
      %s199 = sphi 0, %s185
      %s203 = sphi 0, %s203
      %s205 = sphi 0, %s203
      %s206 = sphi 0, %s205
      %s220 = sphi 0, %s206
      %s224 = sphi 0, %s224
      %s226 = sphi 0, %s224
      %s227 = sphi 0, %s226
      %s241 = sphi 0, %s227
      %s245 = sphi 0, %s245
      %s247 = sphi 0, %s245
      %s248 = sphi 0, %s247
      %s262 = sphi 0, %s248
      %s266 = sphi 0, %s266
      %s268 = sphi 0, %s266
      %s269 = sphi 0, %s268
      %s283 = sphi 0, %s269
      %s287 = sphi 0, %s287
      %s289 = sphi 0, %s287
      %s290 = sphi 0, %s289
      %s304 = sphi 0, %s290
      %s308 = sphi 0, %s308
      %s310 = sphi 0, %s308
      %s311 = sphi 0, %s310
      %s325 = sphi 0, %s311
      %s329 = sphi 0, %s329
      %s331 = sphi 0, %s329
      %s332 = sphi 0, %s331
      %s346 = sphi 0, %s332
      %s350 = sphi 0, %s350
      %s352 = sphi 0, %s350
      %s353 = sphi 0, %s352
      %s367 = sphi 0, %s353
      %s375 = sphi 0, %s377
      %s378 = sphi 0, %s375
      %s379 = sphi 0, %s378
      %s395 = sphi 0, %s379
    $region4: #{tpu_custom_call.1} parent=1 // loop_header_branch
      %27 = sbr.rel (%p25) target = $region8
    $region5: #{tpu_custom_call.1} parent=1 // loop_body
      %s29 = ssub.s32 %s24, 1
      %s30 = ssub.s32 %s24, 2
      %s37 = sadd.s32 1, %s32
      %p38 = scmp.ge.s32.totalorder %s37, 2
      %s39 = scalar_select %p38, 0, %s37
      %s40 = sadd.s32 1, %s31
      %s41 = scalar_select %p38, %s40, %s31
      %p42 = scmp.ge.s32.totalorder %s41, 2
      %s43 = scalar_select %p42, 0, %s41
      %s44 = ssub.s32 %s31, %s43
      %p45 = scmp.eq.s32.totalorder %s44, 0
      %s47 = sadd.s32 %s46, 1
      %s48 = scalar_select %p45, %s46, %s47
      %p51 = pneg %p45
      %p52 = scmp.eq.s32.totalorder %s24, 3
      %p53 = por %p51, %p52
      %p54 = scmp.ne.s32.totalorder %s46, %s49
      %p55 = scmp.eq.s32.totalorder %s24, 0
      %p56 = por %p54, %p55
      %p57 = scmp.ne.s32.totalorder %s46, %s49
      %p58 = scmp.eq.s32.totalorder %s29, 3
      %p59 = por %p57, %p58
      %p60 = scmp.ne.s32.totalorder %s49, %s50
      %p61 = scmp.eq.s32.totalorder %s29, 0
      %p62 = por %p60, %p61
      %p63 = scmp.ne.s32.totalorder %s49, %s50
      %p64 = scmp.eq.s32.totalorder %s30, 3
      %p65 = por %p63, %p64
      %p67 = scmp.ne.s32.totalorder %s50, %s66
      %p68 = scmp.eq.s32.totalorder %s30, 0
      %p69 = por %p67, %p68
      %s70 = ssub.s32 %s31, %s43
      %s71 = ssub.s32 %s32, %s39
      %s72 = sor.u32 %s70, %s71
      %p73 = scmp.eq.s32.totalorder %s72, 0
      %s75 = sadd.s32 %s74, 1
      %s76 = scalar_select %p73, %s74, %s75
      %p79 = pneg %p73
      %p80 = scmp.eq.s32.totalorder %s24, 3
      %p81 = por %p79, %p80
      %p82 = scmp.ne.s32.totalorder %s74, %s77
      %p83 = scmp.eq.s32.totalorder %s24, 0
      %p84 = por %p82, %p83
      %p85 = scmp.ne.s32.totalorder %s74, %s77
      %p86 = scmp.eq.s32.totalorder %s29, 3
      %p87 = por %p85, %p86
      %p88 = scmp.ne.s32.totalorder %s77, %s78
      %p89 = scmp.eq.s32.totalorder %s29, 0
      %p90 = por %p88, %p89
      %p91 = scmp.ne.s32.totalorder %s77, %s78
      %p92 = scmp.eq.s32.totalorder %s30, 3
      %p93 = por %p91, %p92
      %p95 = scmp.ne.s32.totalorder %s78, %s94
      %p96 = scmp.eq.s32.totalorder %s30, 0
      %p97 = por %p95, %p96
      %s99 = sadd.s32 %s98, 1
      %p102 = scmp.eq.s32.totalorder %s24, 3
      %p103 = scmp.ne.s32.totalorder %s98, %s100
      %p104 = scmp.eq.s32.totalorder %s24, 0
      %p105 = por %p103, %p104
      %p106 = scmp.ne.s32.totalorder %s98, %s100
      %p107 = scmp.eq.s32.totalorder %s29, 3
      %p108 = por %p106, %p107
      %p109 = scmp.ne.s32.totalorder %s100, %s101
      %p110 = scmp.eq.s32.totalorder %s29, 0
      %p111 = por %p109, %p110
      %p112 = scmp.ne.s32.totalorder %s100, %s101
      %p113 = scmp.eq.s32.totalorder %s30, 3
      %p114 = por %p112, %p113
      %p116 = scmp.ne.s32.totalorder %s101, %s115
      %p117 = scmp.eq.s32.totalorder %s30, 0
      %p118 = por %p116, %p117
      %s120 = sadd.s32 %s119, 1
      %p123 = scmp.eq.s32.totalorder %s24, 3
      %p124 = scmp.ne.s32.totalorder %s119, %s121
      %p125 = scmp.eq.s32.totalorder %s24, 0
      %p126 = por %p124, %p125
      %p127 = scmp.ne.s32.totalorder %s119, %s121
      %p128 = scmp.eq.s32.totalorder %s29, 3
      %p129 = por %p127, %p128
      %p130 = scmp.ne.s32.totalorder %s121, %s122
      %p131 = scmp.eq.s32.totalorder %s29, 0
      %p132 = por %p130, %p131
      %p133 = scmp.ne.s32.totalorder %s121, %s122
      %p134 = scmp.eq.s32.totalorder %s30, 3
      %p135 = por %p133, %p134
      %p137 = scmp.ne.s32.totalorder %s122, %s136
      %p138 = scmp.eq.s32.totalorder %s30, 0
      %p139 = por %p137, %p138
      %s141 = sadd.s32 %s140, 1
      %p144 = scmp.eq.s32.totalorder %s24, 3
      %p145 = scmp.ne.s32.totalorder %s140, %s142
      %p146 = scmp.eq.s32.totalorder %s24, 0
      %p147 = por %p145, %p146
      %p148 = scmp.ne.s32.totalorder %s140, %s142
      %p149 = scmp.eq.s32.totalorder %s29, 3
      %p150 = por %p148, %p149
      %p151 = scmp.ne.s32.totalorder %s142, %s143
      %p152 = scmp.eq.s32.totalorder %s29, 0
      %p153 = por %p151, %p152
      %p154 = scmp.ne.s32.totalorder %s142, %s143
      %p155 = scmp.eq.s32.totalorder %s30, 3
      %p156 = por %p154, %p155
      %p158 = scmp.ne.s32.totalorder %s143, %s157
      %p159 = scmp.eq.s32.totalorder %s30, 0
      %p160 = por %p158, %p159
      %s162 = sadd.s32 %s161, 1
      %p165 = scmp.eq.s32.totalorder %s24, 3
      %p166 = scmp.ne.s32.totalorder %s161, %s163
      %p167 = scmp.eq.s32.totalorder %s24, 0
      %p168 = por %p166, %p167
      %p169 = scmp.ne.s32.totalorder %s161, %s163
      %p170 = scmp.eq.s32.totalorder %s29, 3
      %p171 = por %p169, %p170
      %p172 = scmp.ne.s32.totalorder %s163, %s164
      %p173 = scmp.eq.s32.totalorder %s29, 0
      %p174 = por %p172, %p173
      %p175 = scmp.ne.s32.totalorder %s163, %s164
      %p176 = scmp.eq.s32.totalorder %s30, 3
      %p177 = por %p175, %p176
      %p179 = scmp.ne.s32.totalorder %s164, %s178
      %p180 = scmp.eq.s32.totalorder %s30, 0
      %p181 = por %p179, %p180
      %s183 = sadd.s32 %s182, 1
      %p186 = scmp.eq.s32.totalorder %s24, 3
      %p187 = scmp.ne.s32.totalorder %s182, %s184
      %p188 = scmp.eq.s32.totalorder %s24, 0
      %p189 = por %p187, %p188
      %p190 = scmp.ne.s32.totalorder %s182, %s184
      %p191 = scmp.eq.s32.totalorder %s29, 3
      %p192 = por %p190, %p191
      %p193 = scmp.ne.s32.totalorder %s184, %s185
      %p194 = scmp.eq.s32.totalorder %s29, 0
      %p195 = por %p193, %p194
      %p196 = scmp.ne.s32.totalorder %s184, %s185
      %p197 = scmp.eq.s32.totalorder %s30, 3
      %p198 = por %p196, %p197
      %p200 = scmp.ne.s32.totalorder %s185, %s199
      %p201 = scmp.eq.s32.totalorder %s30, 0
      %p202 = por %p200, %p201
      %s204 = sadd.s32 %s203, 1
      %p207 = scmp.eq.s32.totalorder %s24, 3
      %p208 = scmp.ne.s32.totalorder %s203, %s205
      %p209 = scmp.eq.s32.totalorder %s24, 0
      %p210 = por %p208, %p209
      %p211 = scmp.ne.s32.totalorder %s203, %s205
      %p212 = scmp.eq.s32.totalorder %s29, 3
      %p213 = por %p211, %p212
      %p214 = scmp.ne.s32.totalorder %s205, %s206
      %p215 = scmp.eq.s32.totalorder %s29, 0
      %p216 = por %p214, %p215
      %p217 = scmp.ne.s32.totalorder %s205, %s206
      %p218 = scmp.eq.s32.totalorder %s30, 3
      %p219 = por %p217, %p218
      %p221 = scmp.ne.s32.totalorder %s206, %s220
      %p222 = scmp.eq.s32.totalorder %s30, 0
      %p223 = por %p221, %p222
      %s225 = sadd.s32 %s224, 1
      %p228 = scmp.eq.s32.totalorder %s24, 3
      %p229 = scmp.ne.s32.totalorder %s224, %s226
      %p230 = scmp.eq.s32.totalorder %s24, 0
      %p231 = por %p229, %p230
      %p232 = scmp.ne.s32.totalorder %s224, %s226
      %p233 = scmp.eq.s32.totalorder %s29, 3
      %p234 = por %p232, %p233
      %p235 = scmp.ne.s32.totalorder %s226, %s227
      %p236 = scmp.eq.s32.totalorder %s29, 0
      %p237 = por %p235, %p236
      %p238 = scmp.ne.s32.totalorder %s226, %s227
      %p239 = scmp.eq.s32.totalorder %s30, 3
      %p240 = por %p238, %p239
      %p242 = scmp.ne.s32.totalorder %s227, %s241
      %p243 = scmp.eq.s32.totalorder %s30, 0
      %p244 = por %p242, %p243
      %s246 = sadd.s32 %s245, 1
      %p249 = scmp.eq.s32.totalorder %s24, 3
      %p250 = scmp.ne.s32.totalorder %s245, %s247
      %p251 = scmp.eq.s32.totalorder %s24, 0
      %p252 = por %p250, %p251
      %p253 = scmp.ne.s32.totalorder %s245, %s247
      %p254 = scmp.eq.s32.totalorder %s29, 3
      %p255 = por %p253, %p254
      %p256 = scmp.ne.s32.totalorder %s247, %s248
      %p257 = scmp.eq.s32.totalorder %s29, 0
      %p258 = por %p256, %p257
      %p259 = scmp.ne.s32.totalorder %s247, %s248
      %p260 = scmp.eq.s32.totalorder %s30, 3
      %p261 = por %p259, %p260
      %p263 = scmp.ne.s32.totalorder %s248, %s262
      %p264 = scmp.eq.s32.totalorder %s30, 0
      %p265 = por %p263, %p264
      %s267 = sadd.s32 %s266, 1
      %p270 = scmp.eq.s32.totalorder %s24, 3
      %p271 = scmp.ne.s32.totalorder %s266, %s268
      %p272 = scmp.eq.s32.totalorder %s24, 0
      %p273 = por %p271, %p272
      %p274 = scmp.ne.s32.totalorder %s266, %s268
      %p275 = scmp.eq.s32.totalorder %s29, 3
      %p276 = por %p274, %p275
      %p277 = scmp.ne.s32.totalorder %s268, %s269
      %p278 = scmp.eq.s32.totalorder %s29, 0
      %p279 = por %p277, %p278
      %p280 = scmp.ne.s32.totalorder %s268, %s269
      %p281 = scmp.eq.s32.totalorder %s30, 3
      %p282 = por %p280, %p281
      %p284 = scmp.ne.s32.totalorder %s269, %s283
      %p285 = scmp.eq.s32.totalorder %s30, 0
      %p286 = por %p284, %p285
      %s288 = sadd.s32 %s287, 1
      %p291 = scmp.eq.s32.totalorder %s24, 3
      %p292 = scmp.ne.s32.totalorder %s287, %s289
      %p293 = scmp.eq.s32.totalorder %s24, 0
      %p294 = por %p292, %p293
      %p295 = scmp.ne.s32.totalorder %s287, %s289
      %p296 = scmp.eq.s32.totalorder %s29, 3
      %p297 = por %p295, %p296
      %p298 = scmp.ne.s32.totalorder %s289, %s290
      %p299 = scmp.eq.s32.totalorder %s29, 0
      %p300 = por %p298, %p299
      %p301 = scmp.ne.s32.totalorder %s289, %s290
      %p302 = scmp.eq.s32.totalorder %s30, 3
      %p303 = por %p301, %p302
      %p305 = scmp.ne.s32.totalorder %s290, %s304
      %p306 = scmp.eq.s32.totalorder %s30, 0
      %p307 = por %p305, %p306
      %s309 = sadd.s32 %s308, 1
      %p312 = scmp.eq.s32.totalorder %s24, 3
      %p313 = scmp.ne.s32.totalorder %s308, %s310
      %p314 = scmp.eq.s32.totalorder %s24, 0
      %p315 = por %p313, %p314
      %p316 = scmp.ne.s32.totalorder %s308, %s310
      %p317 = scmp.eq.s32.totalorder %s29, 3
      %p318 = por %p316, %p317
      %p319 = scmp.ne.s32.totalorder %s310, %s311
      %p320 = scmp.eq.s32.totalorder %s29, 0
      %p321 = por %p319, %p320
      %p322 = scmp.ne.s32.totalorder %s310, %s311
      %p323 = scmp.eq.s32.totalorder %s30, 3
      %p324 = por %p322, %p323
      %p326 = scmp.ne.s32.totalorder %s311, %s325
      %p327 = scmp.eq.s32.totalorder %s30, 0
      %p328 = por %p326, %p327
      %s330 = sadd.s32 %s329, 1
      %p333 = scmp.eq.s32.totalorder %s24, 3
      %p334 = scmp.ne.s32.totalorder %s329, %s331
      %p335 = scmp.eq.s32.totalorder %s24, 0
      %p336 = por %p334, %p335
      %p337 = scmp.ne.s32.totalorder %s329, %s331
      %p338 = scmp.eq.s32.totalorder %s29, 3
      %p339 = por %p337, %p338
      %p340 = scmp.ne.s32.totalorder %s331, %s332
      %p341 = scmp.eq.s32.totalorder %s29, 0
      %p342 = por %p340, %p341
      %p343 = scmp.ne.s32.totalorder %s331, %s332
      %p344 = scmp.eq.s32.totalorder %s30, 3
      %p345 = por %p343, %p344
      %p347 = scmp.ne.s32.totalorder %s332, %s346
      %p348 = scmp.eq.s32.totalorder %s30, 0
      %p349 = por %p347, %p348
      %s351 = sadd.s32 %s350, 1
      %p354 = scmp.eq.s32.totalorder %s24, 3
      %p355 = scmp.ne.s32.totalorder %s350, %s352
      %p356 = scmp.eq.s32.totalorder %s24, 0
      %p357 = por %p355, %p356
      %p358 = scmp.ne.s32.totalorder %s350, %s352
      %p359 = scmp.eq.s32.totalorder %s29, 3
      %p360 = por %p358, %p359
      %p361 = scmp.ne.s32.totalorder %s352, %s353
      %p362 = scmp.eq.s32.totalorder %s29, 0
      %p363 = por %p361, %p362
      %p364 = scmp.ne.s32.totalorder %s352, %s353
      %p365 = scmp.eq.s32.totalorder %s30, 3
      %p366 = por %p364, %p365
      %p368 = scmp.ne.s32.totalorder %s353, %s367
      %p369 = scmp.eq.s32.totalorder %s30, 0
      %p370 = por %p368, %p369
      %s371 = ssub.s32 %s31, %s43
      %s372 = ssub.s32 %s32, %s39
      %s373 = sor.u32 %s371, %s372
      %p374 = scmp.eq.s32.totalorder %s373, 0
      %s376 = sadd.s32 %s375, 1
      %s377 = scalar_select %p374, %s375, %s376
      %p380 = pneg %p374
      %p381 = scmp.eq.s32.totalorder %s24, 3
      %p382 = por %p380, %p381
      %p383 = scmp.ne.s32.totalorder %s375, %s378
      %p384 = scmp.eq.s32.totalorder %s24, 0
      %p385 = por %p383, %p384
      %p386 = scmp.ne.s32.totalorder %s375, %s378
      %p387 = scmp.eq.s32.totalorder %s29, 3
      %p388 = por %p386, %p387
      %p389 = scmp.ne.s32.totalorder %s378, %s379
      %p390 = scmp.eq.s32.totalorder %s29, 0
      %p391 = por %p389, %p390
      %p392 = scmp.ne.s32.totalorder %s378, %s379
      %p393 = scmp.eq.s32.totalorder %s30, 3
      %p394 = por %p392, %p393
      %p396 = scmp.ne.s32.totalorder %s379, %s395
      %p397 = scmp.eq.s32.totalorder %s30, 0
      %p398 = por %p396, %p397
      %p399 = scmp.le.s32.totalorder 1, %s24
      %p400 = scmp.lt.s32.totalorder %s24, 5
      %p401 = pnand %p399, %p400
      %p402 = pneg %p401
      // Predicated region
      $region9: #{tpu_custom_call.1} parent=5 // pred_check
        _
      $region10: #{tpu_custom_call.1} parent=5 // pred_check_branch
        %404 = sbr.rel (%p401) target = $region12
      $region11: #{tpu_custom_call.1} parent=5 // pred_region
        %s405 = ssub.s32 %s24, 1
        // Predicated region
        $region13: #{tpu_custom_call.1} parent=11 // pred_check
          %p406 = pneg %p111
        $region14: #{tpu_custom_call.1} parent=11 // pred_check_branch
          %408 = sbr.rel (%p406) target = $region16
        $region15: #{tpu_custom_call.1} parent=11 // pred_region
          _
        $region16: #{tpu_custom_call.1} parent=11 // pred_fallthru
          _
        // Predicated region
        $region17: #{tpu_custom_call.1} parent=11 // pred_check
          %p409 = pneg %p132
        $region18: #{tpu_custom_call.1} parent=11 // pred_check_branch
          %411 = sbr.rel (%p409) target = $region20
        $region19: #{tpu_custom_call.1} parent=11 // pred_region
          _
        $region20: #{tpu_custom_call.1} parent=11 // pred_fallthru
          _
        // Predicated region
        $region21: #{tpu_custom_call.1} parent=11 // pred_check
          %p412 = pneg %p153
        $region22: #{tpu_custom_call.1} parent=11 // pred_check_branch
          %414 = sbr.rel (%p412) target = $region24
        $region23: #{tpu_custom_call.1} parent=11 // pred_region
          _
        $region24: #{tpu_custom_call.1} parent=11 // pred_fallthru
          _
        // Predicated region
        $region25: #{tpu_custom_call.1} parent=11 // pred_check
          %p415 = pneg %p174
        $region26: #{tpu_custom_call.1} parent=11 // pred_check_branch
          %417 = sbr.rel (%p415) target = $region28
        $region27: #{tpu_custom_call.1} parent=11 // pred_region
          _
        $region28: #{tpu_custom_call.1} parent=11 // pred_fallthru
          _
        // Predicated region
        $region29: #{tpu_custom_call.1} parent=11 // pred_check
          %p418 = pneg %p195
        $region30: #{tpu_custom_call.1} parent=11 // pred_check_branch
          %420 = sbr.rel (%p418) target = $region32
        $region31: #{tpu_custom_call.1} parent=11 // pred_region
          _
        $region32: #{tpu_custom_call.1} parent=11 // pred_fallthru
          _
        // Predicated region
        $region33: #{tpu_custom_call.1} parent=11 // pred_check
          %p421 = pneg %p216
        $region34: #{tpu_custom_call.1} parent=11 // pred_check_branch
          %423 = sbr.rel (%p421) target = $region36
        $region35: #{tpu_custom_call.1} parent=11 // pred_region
          _
        $region36: #{tpu_custom_call.1} parent=11 // pred_fallthru
          _
        // Predicated region
        $region37: #{tpu_custom_call.1} parent=11 // pred_check
          %p424 = pneg %p237
        $region38: #{tpu_custom_call.1} parent=11 // pred_check_branch
          %426 = sbr.rel (%p424) target = $region40
        $region39: #{tpu_custom_call.1} parent=11 // pred_region
          _
        $region40: #{tpu_custom_call.1} parent=11 // pred_fallthru
          _
        // Predicated region
        $region41: #{tpu_custom_call.1} parent=11 // pred_check
          %p427 = pneg %p258
        $region42: #{tpu_custom_call.1} parent=11 // pred_check_branch
          %429 = sbr.rel (%p427) target = $region44
        $region43: #{tpu_custom_call.1} parent=11 // pred_region
          _
        $region44: #{tpu_custom_call.1} parent=11 // pred_fallthru
          _
        // Predicated region
        $region45: #{tpu_custom_call.1} parent=11 // pred_check
          %p430 = pneg %p279
        $region46: #{tpu_custom_call.1} parent=11 // pred_check_branch
          %432 = sbr.rel (%p430) target = $region48
        $region47: #{tpu_custom_call.1} parent=11 // pred_region
          _
        $region48: #{tpu_custom_call.1} parent=11 // pred_fallthru
          _
        // Predicated region
        $region49: #{tpu_custom_call.1} parent=11 // pred_check
          %p433 = pneg %p300
        $region50: #{tpu_custom_call.1} parent=11 // pred_check_branch
          %435 = sbr.rel (%p433) target = $region52
        $region51: #{tpu_custom_call.1} parent=11 // pred_region
          _
        $region52: #{tpu_custom_call.1} parent=11 // pred_fallthru
          _
        // Predicated region
        $region53: #{tpu_custom_call.1} parent=11 // pred_check
          %p436 = pneg %p321
        $region54: #{tpu_custom_call.1} parent=11 // pred_check_branch
          %438 = sbr.rel (%p436) target = $region56
        $region55: #{tpu_custom_call.1} parent=11 // pred_region
          _
        $region56: #{tpu_custom_call.1} parent=11 // pred_fallthru
          _
        // Predicated region
        $region57: #{tpu_custom_call.1} parent=11 // pred_check
          %p439 = pneg %p342
        $region58: #{tpu_custom_call.1} parent=11 // pred_check_branch
          %441 = sbr.rel (%p439) target = $region60
        $region59: #{tpu_custom_call.1} parent=11 // pred_region
          _
        $region60: #{tpu_custom_call.1} parent=11 // pred_fallthru
          _
        // Predicated region
        $region61: #{tpu_custom_call.1} parent=11 // pred_check
          %p442 = pneg %p363
        $region62: #{tpu_custom_call.1} parent=11 // pred_check_branch
          %444 = sbr.rel (%p442) target = $region64
        $region63: #{tpu_custom_call.1} parent=11 // pred_region
          _
        $region64: #{tpu_custom_call.1} parent=11 // pred_fallthru
          _
      $region12: #{tpu_custom_call.1} parent=5 // pred_fallthru
        _
      %p445 = scmp.lt.s32.totalorder %s24, 4
      // Predicated region
      $region65: #{tpu_custom_call.1} parent=5 // pred_check
        %p446 = pneg %p445
      $region66: #{tpu_custom_call.1} parent=5 // pred_check_branch
        %448 = sbr.rel (%p446) target = $region68
      $region67: #{tpu_custom_call.1} parent=5 // pred_region
        // Predicated region
        $region69: #{tpu_custom_call.1} parent=67 // pred_check
          %p449 = pneg %p56
        $region70: #{tpu_custom_call.1} parent=67 // pred_check_branch
          %451 = sbr.rel (%p449) target = $region72
        $region71: #{tpu_custom_call.1} parent=67 // pred_region
          %p452 = scmp.lt.s32.totalorder %s31, 1
          %s453 = scalar_select %p452, %s31, 1
          %s454 = smul.addr %s453, 2
          %s455 = smul.addr %s454, 8
          %s456 = scalar_lea.vmem %s0, %s455
        $region72: #{tpu_custom_call.1} parent=67 // pred_fallthru
          _
        // Predicated region
        $region73: #{tpu_custom_call.1} parent=67 // pred_check
          %p457 = pneg %p84
        $region74: #{tpu_custom_call.1} parent=67 // pred_check_branch
          %459 = sbr.rel (%p457) target = $region76
        $region75: #{tpu_custom_call.1} parent=67 // pred_region
          %p460 = scmp.lt.s32.totalorder %s31, 1
          %s461 = scalar_select %p460, %s31, 1
          %p462 = scmp.lt.s32.totalorder %s32, 1
          %s463 = scalar_select %p462, %s32, 1
          %s464 = smul.addr %s461, 2
          %s465 = sadd.s32 %s463, %s464
          %s466 = smul.addr %s465, 8
          %s467 = scalar_lea.vmem %s1, %s466
        $region76: #{tpu_custom_call.1} parent=67 // pred_fallthru
          _
      $region68: #{tpu_custom_call.1} parent=5 // pred_fallthru
        _
      %p468 = scmp.le.s32.totalorder 1, %s24
      %p469 = scmp.lt.s32.totalorder %s24, 5
      %p470 = pnand %p468, %p469
      %p471 = pneg %p470
      // Predicated region
      $region77: #{tpu_custom_call.1} parent=5 // pred_check
        _
      $region78: #{tpu_custom_call.1} parent=5 // pred_check_branch
        %473 = sbr.rel (%p470) target = $region80
      $region79: #{tpu_custom_call.1} parent=5 // pred_region
        %s474 = ssub.s32 %s24, 1
        %p475 = scmp.lt.s32.totalorder %s33, 1
        %s476 = scalar_select %p475, %s33, 1
        %s477 = smul.addr %s476, 2
        %s478 = smul.addr %s477, 8
        %s479 = scalar_lea.vmem %s0, %s478
        %p480 = pneg %p62
        %p481 = pneg %p59
        %p482 = scmp.lt.s32.totalorder %s33, 1
        %s483 = scalar_select %p482, %s33, 1
        %p484 = scmp.lt.s32.totalorder %s34, 1
        %s485 = scalar_select %p484, %s34, 1
        %s486 = smul.addr %s483, 2
        %s487 = sadd.s32 %s485, %s486
        %s488 = smul.addr %s487, 8
        %s489 = scalar_lea.vmem %s1, %s488
        %p490 = pneg %p90
        %p491 = pneg %p87
        %p492 = pneg %p111
        %p493 = pneg %p108
        %p494 = pneg %p132
        %p495 = pneg %p129
        %p496 = pneg %p153
        %p497 = pneg %p150
        %p498 = pneg %p174
        %p499 = pneg %p171
        %p500 = pneg %p195
        %p501 = pneg %p192
        %p502 = pneg %p216
        %p503 = pneg %p213
        %p504 = pneg %p237
        %p505 = pneg %p234
        %p506 = pneg %p258
        %p507 = pneg %p255
        %p508 = pneg %p279
        %p509 = pneg %p276
        %p510 = pneg %p300
        %p511 = pneg %p297
        %p512 = pneg %p321
        %p513 = pneg %p318
        %p514 = pneg %p342
        %p515 = pneg %p339
        %p516 = pneg %p363
        %p517 = pneg %p360
        %p518 = pneg %p391
        %p519 = pneg %p388
        %s520 = sand.u32 %s378, 1
        %s521 = scalar_lea.sflag [#allocation3], %s520
        %s522 = sand.u32 %s378, 1
        %s523 = smul.addr %s522, 8
        %s524 = scalar_lea.vmem [#allocation2], %s523
        %p525 = scmp.lt.s32.totalorder %s33, 1
        %s526 = scalar_select %p525, %s33, 1
        %s527 = smul.addr %s526, 2
        %s528 = smul.addr %s527, 8
        %s529 = scalar_lea.vmem %s0, %s528
        %p530 = scmp.lt.s32.totalorder %s33, 1
        %s531 = scalar_select %p530, %s33, 1
        %p532 = scmp.lt.s32.totalorder %s34, 1
        %s533 = scalar_select %p532, %s34, 1
        %s534 = smul.addr %s531, 2
        %s535 = sadd.s32 %s533, %s534
        %s536 = smul.addr %s535, 8
        %s537 = scalar_lea.vmem %s1, %s536
        %v539 = vld [vmem:[%s529] sm:$0xff]
        %v540 = vld [vmem:[%s529 + $0x8] sm:$0xff]
        %v541 = vld [vmem:[%s537] sm:$0xff]
        %v542 = vld [vmem:[%s2] sm:$0x1]
        %v543 = vld [vmem:[%s3] sm:$0x1]
        %vm544 = vcmask 261120
        %v545 = vsel %vm544, %v539, 0.0
        %546 = vadd.xlane.f32.xlu0 %v545
        %v547 = vpop.xlane.xlu0 %546
        %v548 = vsel %vm544, %v540, 0.0
        %549 = vadd.xlane.f32.xlu0 %v548
        %v550 = vpop.xlane.xlu0 %549
        %v551 = vrcp.pop 32.0
        %v552 = vmul.f32 %v547, %v551
        %v553 = vmul.f32 %v550, %v551
        %v554 = vsub.f32 %v539, %v552
        %v555 = vsub.f32 %v540, %v553
        %v556 = vmul.f32 %v554, %v554
        %v557 = vmul.f32 %v555, %v555
        %v558 = vsel %vm544, %v556, 0.0
        %559 = vadd.xlane.f32.xlu0 %v558
        %v560 = vpop.xlane.xlu0 %559
        %v561 = vsel %vm544, %v557, 0.0
        %562 = vadd.xlane.f32.xlu0 %v561
        %v563 = vpop.xlane.xlu0 %562
        %v564 = vmul.f32 %v560, %v551
        %v565 = vmul.f32 %v563, %v551
        %v566 = vadd.f32 %v564, 1e-05
        %v567 = vadd.f32 %v565, 1e-05
        %v568 = vrsqrt.pop %v566
        %v569 = vrsqrt.pop %v567
        %v570 = vmul.f32 %v554, %v568
        %v571 = vmul.f32 %v555, %v569
        %v573 = vlaneseq
        %v574 = vshrl.u32 %v573, 7
        %v575 = vsub.s32 0, %v574
        %v576 = vrot.slane %v542, %v575
        %v578 = vmul.f32 %v570, %v576
        %v579 = vmul.f32 %v571, %v576
        %v581 = vlaneseq
        %v582 = vshrl.u32 %v581, 7
        %v583 = vsub.s32 0, %v582
        %v584 = vrot.slane %v543, %v583
        %v586 = vadd.f32 %v578, %v584
        %v587 = vadd.f32 %v579, %v584
        %v588 = vpack.c.bf16 %v587, %v586
        %v589 = vsel %vm544, %v541, 0.0
        %590 = vadd.xlane.f32.xlu0 %v589
        %v591 = vpop.xlane.xlu0 %590
        %v592 = vmul.f32 %v591, %v551
        %v593 = vsub.f32 %v541, %v592
        %v594 = vmul.f32 %v593, %v593
        %v595 = vsel %vm544, %v594, 0.0
        %596 = vadd.xlane.f32.xlu0 %v595
        %v597 = vpop.xlane.xlu0 %596
        %v598 = vmul.f32 %v597, %v551
        %v599 = vadd.f32 %v598, 1e-05
        %v600 = vrsqrt.pop %v599
        %v601 = vmul.f32 %v593, %v600
        %v602 = vmul.f32 %v601, %v576
        %v603 = vadd.f32 %v602, %v584
        %v604 = vpack.c.bf16 %v603, %v603
        %v605 = vld [vmem:[%s4] sm:$0xf]
        %v606 = vld [vmem:[%s4 + $0x4] sm:$0xf]
        %v607 = vld [vmem:[%s4 + $0x8] sm:$0xf]
        %v608 = vld [vmem:[%s4 + $0xc] sm:$0xf]
        %v613 = vunpack.c.l.b16 %v605
        %v614 = vunpack.c.l.b16 %v606
        %v615 = vunpack.c.l.b16 %v607
        %v616 = vunpack.c.l.b16 %v608
        %v617 = vpack.c.b16 %v614, %v613
        %v618 = vpack.c.b16 %v616, %v615
        %v622 = vsel %vm544, %v604, 0
        %624 = vmatprep.subr.bf16.mxu0 0
        %625 = vmatpush1.bf16.msra.mxu0 %v617
        %626 = vmatprep.subr.bf16.mxu0 0
        %627 = vmatpush1.bf16.msra.mxu0 %v618
        %628 = vmatprep.subr.bf16.mxu0 0
        %629 = vmatpush1.bf16.msra.mxu0 0
        %630 = vmatprep.subr.bf16.mxu0 0
        %631 = vmatpush1.bf16.msra.mxu0 0
        %632 = vmatprep.subr.bf16.mxu0 0
        %633 = vmatpush1.bf16.msra.mxu0 0
        %634 = vmatprep.subr.bf16.mxu0 0
        %635 = vmatpush1.bf16.msra.mxu0 0
        %636 = vmatprep.subr.bf16.mxu0 0
        %637 = vmatpush1.bf16.msra.mxu0 0
        %638 = vmatprep.subr.bf16.mxu0 0
        %639 = vmatpush1.bf16.msra.mxu0 0
        %640 = vmatprep.subr.bf16.mxu0 0
        %641 = vmatpush1.bf16.msra.mxu0 0
        %642 = vmatprep.subr.bf16.mxu0 0
        %643 = vmatpush1.bf16.msra.mxu0 0
        %644 = vmatprep.subr.bf16.mxu0 0
        %645 = vmatpush1.bf16.msra.mxu0 0
        %646 = vmatprep.subr.bf16.mxu0 0
        %647 = vmatpush1.bf16.msra.mxu0 0
        %648 = vmatprep.subr.bf16.mxu0 0
        %649 = vmatpush1.bf16.msra.mxu0 0
        %650 = vmatprep.subr.bf16.mxu0 0
        %651 = vmatpush1.bf16.msra.mxu0 0
        %652 = vmatprep.subr.bf16.mxu0 0
        %653 = vmatpush1.bf16.msra.mxu0 0
        %654 = vmatprep.subr.bf16.mxu0 0
        %655 = vmatpush1.bf16.msra.mxu0 0
        %656 = vmatprep.mubr.bf16.mxu0 0
        %657 = vmatmul.mubr.bf16.gmra.mrb[0].mxu0 %v622
        %v658 = vpop.f32.mrb[0].mxu0
        %v659 = vadd.f32 0.0, %v658
        %v660 = vpop.f32.mrb[0].mxu0
        %v661 = vpop.f32.mrb[0].mxu0
        %v662 = vpop.f32.mrb[0].mxu0
        %663 = vdwg.mxu0
        %v664 = vld [vmem:[%s5] sm:$0xf]
        %v665 = vld [vmem:[%s5 + $0x4] sm:$0xf]
        %v666 = vld [vmem:[%s5 + $0x8] sm:$0xf]
        %v667 = vld [vmem:[%s5 + $0xc] sm:$0xf]
        %v672 = vunpack.c.l.b16 %v664
        %v673 = vunpack.c.l.b16 %v665
        %v674 = vunpack.c.l.b16 %v666
        %v675 = vunpack.c.l.b16 %v667
        %v676 = vpack.c.b16 %v673, %v672
        %v677 = vpack.c.b16 %v675, %v674
        %v681 = vsel %vm544, %v588, 0
        %683 = vmatprep.subr.bf16.mxu0 0
        %684 = vmatpush1.bf16.msra.mxu0 %v676
        %685 = vmatprep.subr.bf16.mxu0 0
        %686 = vmatpush1.bf16.msra.mxu0 %v677
        %687 = vmatprep.subr.bf16.mxu0 0
        %688 = vmatpush1.bf16.msra.mxu0 0
        %689 = vmatprep.subr.bf16.mxu0 0
        %690 = vmatpush1.bf16.msra.mxu0 0
        %691 = vmatprep.subr.bf16.mxu0 0
        %692 = vmatpush1.bf16.msra.mxu0 0
        %693 = vmatprep.subr.bf16.mxu0 0
        %694 = vmatpush1.bf16.msra.mxu0 0
        %695 = vmatprep.subr.bf16.mxu0 0
        %696 = vmatpush1.bf16.msra.mxu0 0
        %697 = vmatprep.subr.bf16.mxu0 0
        %698 = vmatpush1.bf16.msra.mxu0 0
        %699 = vmatprep.subr.bf16.mxu0 0
        %700 = vmatpush1.bf16.msra.mxu0 0
        %701 = vmatprep.subr.bf16.mxu0 0
        %702 = vmatpush1.bf16.msra.mxu0 0
        %703 = vmatprep.subr.bf16.mxu0 0
        %704 = vmatpush1.bf16.msra.mxu0 0
        %705 = vmatprep.subr.bf16.mxu0 0
        %706 = vmatpush1.bf16.msra.mxu0 0
        %707 = vmatprep.subr.bf16.mxu0 0
        %708 = vmatpush1.bf16.msra.mxu0 0
        %709 = vmatprep.subr.bf16.mxu0 0
        %710 = vmatpush1.bf16.msra.mxu0 0
        %711 = vmatprep.subr.bf16.mxu0 0
        %712 = vmatpush1.bf16.msra.mxu0 0
        %713 = vmatprep.subr.bf16.mxu0 0
        %714 = vmatpush1.bf16.msra.mxu0 0
        %715 = vmatprep.mubr.bf16.mxu0 0
        %716 = vmatmul.mubr.bf16.gmra.mrb[0].mxu0 %v681
        %v717 = vpop.f32.mrb[0].mxu0
        %v718 = vadd.f32 0.0, %v717
        %v719 = vpop.f32.mrb[0].mxu0
        %v720 = vpop.f32.mrb[0].mxu0
        %v721 = vadd.f32 0.0, %v720
        %v722 = vpop.f32.mrb[0].mxu0
        %723 = vdwg.mxu0
        %v724 = vld [vmem:[%s6] sm:$0xf]
        %v725 = vld [vmem:[%s6 + $0x4] sm:$0xf]
        %v726 = vld [vmem:[%s6 + $0x8] sm:$0xf]
        %v727 = vld [vmem:[%s6 + $0xc] sm:$0xf]
        %v732 = vunpack.c.l.b16 %v724
        %v733 = vunpack.c.l.b16 %v725
        %v734 = vunpack.c.l.b16 %v726
        %v735 = vunpack.c.l.b16 %v727
        %v736 = vpack.c.b16 %v733, %v732
        %v737 = vpack.c.b16 %v735, %v734
        %740 = vmatprep.subr.bf16.mxu0 0
        %741 = vmatpush1.bf16.msra.mxu0 %v736
        %742 = vmatprep.subr.bf16.mxu0 0
        %743 = vmatpush1.bf16.msra.mxu0 %v737
        %744 = vmatprep.subr.bf16.mxu0 0
        %745 = vmatpush1.bf16.msra.mxu0 0
        %746 = vmatprep.subr.bf16.mxu0 0
        %747 = vmatpush1.bf16.msra.mxu0 0
        %748 = vmatprep.subr.bf16.mxu0 0
        %749 = vmatpush1.bf16.msra.mxu0 0
        %750 = vmatprep.subr.bf16.mxu0 0
        %751 = vmatpush1.bf16.msra.mxu0 0
        %752 = vmatprep.subr.bf16.mxu0 0
        %753 = vmatpush1.bf16.msra.mxu0 0
        %754 = vmatprep.subr.bf16.mxu0 0
        %755 = vmatpush1.bf16.msra.mxu0 0
        %756 = vmatprep.subr.bf16.mxu0 0
        %757 = vmatpush1.bf16.msra.mxu0 0
        %758 = vmatprep.subr.bf16.mxu0 0
        %759 = vmatpush1.bf16.msra.mxu0 0
        %760 = vmatprep.subr.bf16.mxu0 0
        %761 = vmatpush1.bf16.msra.mxu0 0
        %762 = vmatprep.subr.bf16.mxu0 0
        %763 = vmatpush1.bf16.msra.mxu0 0
        %764 = vmatprep.subr.bf16.mxu0 0
        %765 = vmatpush1.bf16.msra.mxu0 0
        %766 = vmatprep.subr.bf16.mxu0 0
        %767 = vmatpush1.bf16.msra.mxu0 0
        %768 = vmatprep.subr.bf16.mxu0 0
        %769 = vmatpush1.bf16.msra.mxu0 0
        %770 = vmatprep.subr.bf16.mxu0 0
        %771 = vmatpush1.bf16.msra.mxu0 0
        %772 = vmatprep.mubr.bf16.mxu0 0
        %773 = vmatmul.mubr.bf16.gmra.mrb[0].mxu0 %v681
        %v774 = vpop.f32.mrb[0].mxu0
        %v775 = vadd.f32 0.0, %v774
        %v776 = vpop.f32.mrb[0].mxu0
        %v777 = vpop.f32.mrb[0].mxu0
        %v778 = vadd.f32 0.0, %v777
        %v779 = vpop.f32.mrb[0].mxu0
        %780 = vdwg.mxu0
        %v781 = vpack.c.bf16 %v659, %v659
        %v782 = vpack.c.bf16 %v721, %v718
        %vm783 = vcmask 64512
        %v785 = vsel %vm783, %v781, 0
        %v788 = vsel %vm783, %v782, 0
        %790 = vmatprep.subr.bf16.mxu0 0
        %791 = vmatpush1.bf16.xpose.msra.mxu0 %v788
        %792 = vmatprep.subr.bf16.mxu0 0
        %793 = vmatpush1.bf16.xpose.msra.mxu0 0
        %794 = vmatprep.subr.bf16.mxu0 0
        %795 = vmatpush1.bf16.xpose.msra.mxu0 0
        %796 = vmatprep.subr.bf16.mxu0 0
        %797 = vmatpush1.bf16.xpose.msra.mxu0 0
        %798 = vmatprep.subr.bf16.mxu0 0
        %799 = vmatpush1.bf16.xpose.msra.mxu0 0
        %800 = vmatprep.subr.bf16.mxu0 0
        %801 = vmatpush1.bf16.xpose.msra.mxu0 0
        %802 = vmatprep.subr.bf16.mxu0 0
        %803 = vmatpush1.bf16.xpose.msra.mxu0 0
        %804 = vmatprep.subr.bf16.mxu0 0
        %805 = vmatpush1.bf16.xpose.msra.mxu0 0
        %806 = vmatprep.subr.bf16.mxu0 0
        %807 = vmatpush1.bf16.xpose.msra.mxu0 0
        %808 = vmatprep.subr.bf16.mxu0 0
        %809 = vmatpush1.bf16.xpose.msra.mxu0 0
        %810 = vmatprep.subr.bf16.mxu0 0
        %811 = vmatpush1.bf16.xpose.msra.mxu0 0
        %812 = vmatprep.subr.bf16.mxu0 0
        %813 = vmatpush1.bf16.xpose.msra.mxu0 0
        %814 = vmatprep.subr.bf16.mxu0 0
        %815 = vmatpush1.bf16.xpose.msra.mxu0 0
        %816 = vmatprep.subr.bf16.mxu0 0
        %817 = vmatpush1.bf16.xpose.msra.mxu0 0
        %818 = vmatprep.subr.bf16.mxu0 0
        %819 = vmatpush1.bf16.xpose.msra.mxu0 0
        %820 = vmatprep.subr.bf16.mxu0 0
        %821 = vmatpush1.bf16.xpose.msra.mxu0 0
        %822 = vmatprep.mubr.bf16.mxu0 0
        %823 = vmatmul.mubr.bf16.gmra.mrb[0].mxu0 %v785
        %v824 = vpop.f32.mrb[0].mxu0
        %v825 = vadd.f32 0.0, %v824
        %v826 = vpop.f32.mrb[0].mxu0
        %v827 = vpop.f32.mrb[0].mxu0
        %v828 = vpop.f32.mrb[0].mxu0
        %829 = vdwg.mxu0
        %vm830 = vcmask 130048
        %v831 = vsel %vm830, %v825, -inf
        %832 = vmax.xlane.f32.xlu0 %v831
        %v833 = vpop.xlane.xlu0 %832
        %v834 = vsub.f32 %v825, %v833
        %v835 = vmul.f32 %v834, 1.442695
        %v836 = vpow.pop %v835
        %v837 = vsel %vm830, %v836, 0.0
        %838 = vadd.xlane.f32.xlu0 %v837
        %v839 = vpop.xlane.xlu0 %838
        %v840 = vrcp.pop %v839
        %v841 = vmul.f32 %v836, %v840
        %v842 = vpack.c.bf16 %v841, %v841
        %v843 = vpack.c.bf16 %v778, %v775
        %v845 = vsel %vm830, %v842, 0
        %847 = vmatprep.subr.bf16.mxu0 0
        %848 = vmatpush1.bf16.msra.mxu0 %v843
        %849 = vmatprep.subr.bf16.mxu0 0
        %850 = vmatpush1.bf16.msra.mxu0 0
        %851 = vmatprep.subr.bf16.mxu0 0
        %852 = vmatpush1.bf16.msra.mxu0 0
        %853 = vmatprep.subr.bf16.mxu0 0
        %854 = vmatpush1.bf16.msra.mxu0 0
        %855 = vmatprep.subr.bf16.mxu0 0
        %856 = vmatpush1.bf16.msra.mxu0 0
        %857 = vmatprep.subr.bf16.mxu0 0
        %858 = vmatpush1.bf16.msra.mxu0 0
        %859 = vmatprep.subr.bf16.mxu0 0
        %860 = vmatpush1.bf16.msra.mxu0 0
        %861 = vmatprep.subr.bf16.mxu0 0
        %862 = vmatpush1.bf16.msra.mxu0 0
        %863 = vmatprep.subr.bf16.mxu0 0
        %864 = vmatpush1.bf16.msra.mxu0 0
        %865 = vmatprep.subr.bf16.mxu0 0
        %866 = vmatpush1.bf16.msra.mxu0 0
        %867 = vmatprep.subr.bf16.mxu0 0
        %868 = vmatpush1.bf16.msra.mxu0 0
        %869 = vmatprep.subr.bf16.mxu0 0
        %870 = vmatpush1.bf16.msra.mxu0 0
        %871 = vmatprep.subr.bf16.mxu0 0
        %872 = vmatpush1.bf16.msra.mxu0 0
        %873 = vmatprep.subr.bf16.mxu0 0
        %874 = vmatpush1.bf16.msra.mxu0 0
        %875 = vmatprep.subr.bf16.mxu0 0
        %876 = vmatpush1.bf16.msra.mxu0 0
        %877 = vmatprep.subr.bf16.mxu0 0
        %878 = vmatpush1.bf16.msra.mxu0 0
        %879 = vmatprep.mubr.bf16.mxu0 0
        %880 = vmatmul.mubr.bf16.gmra.mrb[0].mxu0 %v845
        %v881 = vpop.f32.mrb[0].mxu0
        %v882 = vadd.f32 0.0, %v881
        %v883 = vpop.f32.mrb[0].mxu0
        %v884 = vpop.f32.mrb[0].mxu0
        %v885 = vpop.f32.mrb[0].mxu0
        %886 = vdwg.mxu0
        %v887 = vpack.c.bf16 %v882, %v882
        %v888 = vld [vmem:[%s7] sm:$0xf]
        %s889 = scalar_lea.vmem %s4, 16
        %v890 = vld [vmem:[%s889] sm:$0xf]
        %v891 = vld [vmem:[%s889 + $0x4] sm:$0xf]
        %v892 = vld [vmem:[%s889 + $0x8] sm:$0xf]
        %v893 = vld [vmem:[%s889 + $0xc] sm:$0xf]
        %v898 = vunpack.c.l.b16 %v890
        %v899 = vunpack.c.l.b16 %v891
        %v900 = vunpack.c.l.b16 %v892
        %v901 = vunpack.c.l.b16 %v893
        %v902 = vpack.c.b16 %v899, %v898
        %v903 = vpack.c.b16 %v901, %v900
        %906 = vmatprep.subr.bf16.mxu0 0
        %907 = vmatpush1.bf16.msra.mxu0 %v902
        %908 = vmatprep.subr.bf16.mxu0 0
        %909 = vmatpush1.bf16.msra.mxu0 %v903
        %910 = vmatprep.subr.bf16.mxu0 0
        %911 = vmatpush1.bf16.msra.mxu0 0
        %912 = vmatprep.subr.bf16.mxu0 0
        %913 = vmatpush1.bf16.msra.mxu0 0
        %914 = vmatprep.subr.bf16.mxu0 0
        %915 = vmatpush1.bf16.msra.mxu0 0
        %916 = vmatprep.subr.bf16.mxu0 0
        %917 = vmatpush1.bf16.msra.mxu0 0
        %918 = vmatprep.subr.bf16.mxu0 0
        %919 = vmatpush1.bf16.msra.mxu0 0
        %920 = vmatprep.subr.bf16.mxu0 0
        %921 = vmatpush1.bf16.msra.mxu0 0
        %922 = vmatprep.subr.bf16.mxu0 0
        %923 = vmatpush1.bf16.msra.mxu0 0
        %924 = vmatprep.subr.bf16.mxu0 0
        %925 = vmatpush1.bf16.msra.mxu0 0
        %926 = vmatprep.subr.bf16.mxu0 0
        %927 = vmatpush1.bf16.msra.mxu0 0
        %928 = vmatprep.subr.bf16.mxu0 0
        %929 = vmatpush1.bf16.msra.mxu0 0
        %930 = vmatprep.subr.bf16.mxu0 0
        %931 = vmatpush1.bf16.msra.mxu0 0
        %932 = vmatprep.subr.bf16.mxu0 0
        %933 = vmatpush1.bf16.msra.mxu0 0
        %934 = vmatprep.subr.bf16.mxu0 0
        %935 = vmatpush1.bf16.msra.mxu0 0
        %936 = vmatprep.subr.bf16.mxu0 0
        %937 = vmatpush1.bf16.msra.mxu0 0
        %938 = vmatprep.mubr.bf16.mxu0 0
        %939 = vmatmul.mubr.bf16.gmra.mrb[0].mxu0 %v622
        %v940 = vpop.f32.mrb[0].mxu0
        %v941 = vadd.f32 0.0, %v940
        %v942 = vpop.f32.mrb[0].mxu0
        %v943 = vpop.f32.mrb[0].mxu0
        %v944 = vpop.f32.mrb[0].mxu0
        %945 = vdwg.mxu0
        %s946 = scalar_lea.vmem %s5, 16
        %v947 = vld [vmem:[%s946] sm:$0xf]
        %v948 = vld [vmem:[%s946 + $0x4] sm:$0xf]
        %v949 = vld [vmem:[%s946 + $0x8] sm:$0xf]
        %v950 = vld [vmem:[%s946 + $0xc] sm:$0xf]
        %v955 = vunpack.c.l.b16 %v947
        %v956 = vunpack.c.l.b16 %v948
        %v957 = vunpack.c.l.b16 %v949
        %v958 = vunpack.c.l.b16 %v950
        %v959 = vpack.c.b16 %v956, %v955
        %v960 = vpack.c.b16 %v958, %v957
        %963 = vmatprep.subr.bf16.mxu0 0
        %964 = vmatpush1.bf16.msra.mxu0 %v959
        %965 = vmatprep.subr.bf16.mxu0 0
        %966 = vmatpush1.bf16.msra.mxu0 %v960
        %967 = vmatprep.subr.bf16.mxu0 0
        %968 = vmatpush1.bf16.msra.mxu0 0
        %969 = vmatprep.subr.bf16.mxu0 0
        %970 = vmatpush1.bf16.msra.mxu0 0
        %971 = vmatprep.subr.bf16.mxu0 0
        %972 = vmatpush1.bf16.msra.mxu0 0
        %973 = vmatprep.subr.bf16.mxu0 0
        %974 = vmatpush1.bf16.msra.mxu0 0
        %975 = vmatprep.subr.bf16.mxu0 0
        %976 = vmatpush1.bf16.msra.mxu0 0
        %977 = vmatprep.subr.bf16.mxu0 0
        %978 = vmatpush1.bf16.msra.mxu0 0
        %979 = vmatprep.subr.bf16.mxu0 0
        %980 = vmatpush1.bf16.msra.mxu0 0
        %981 = vmatprep.subr.bf16.mxu0 0
        %982 = vmatpush1.bf16.msra.mxu0 0
        %983 = vmatprep.subr.bf16.mxu0 0
        %984 = vmatpush1.bf16.msra.mxu0 0
        %985 = vmatprep.subr.bf16.mxu0 0
        %986 = vmatpush1.bf16.msra.mxu0 0
        %987 = vmatprep.subr.bf16.mxu0 0
        %988 = vmatpush1.bf16.msra.mxu0 0
        %989 = vmatprep.subr.bf16.mxu0 0
        %990 = vmatpush1.bf16.msra.mxu0 0
        %991 = vmatprep.subr.bf16.mxu0 0
        %992 = vmatpush1.bf16.msra.mxu0 0
        %993 = vmatprep.subr.bf16.mxu0 0
        %994 = vmatpush1.bf16.msra.mxu0 0
        %995 = vmatprep.mubr.bf16.mxu0 0
        %996 = vmatmul.mubr.bf16.gmra.mrb[0].mxu0 %v681
        %v997 = vpop.f32.mrb[0].mxu0
        %v998 = vadd.f32 0.0, %v997
        %v999 = vpop.f32.mrb[0].mxu0
        %v1000 = vpop.f32.mrb[0].mxu0
        %v1001 = vadd.f32 0.0, %v1000
        %v1002 = vpop.f32.mrb[0].mxu0
        %1003 = vdwg.mxu0
        %s1004 = scalar_lea.vmem %s6, 16
        %v1005 = vld [vmem:[%s1004] sm:$0xf]
        %v1006 = vld [vmem:[%s1004 + $0x4] sm:$0xf]
        %v1007 = vld [vmem:[%s1004 + $0x8] sm:$0xf]
        %v1008 = vld [vmem:[%s1004 + $0xc] sm:$0xf]
        %v1013 = vunpack.c.l.b16 %v1005
        %v1014 = vunpack.c.l.b16 %v1006
        %v1015 = vunpack.c.l.b16 %v1007
        %v1016 = vunpack.c.l.b16 %v1008
        %v1017 = vpack.c.b16 %v1014, %v1013
        %v1018 = vpack.c.b16 %v1016, %v1015
        %1021 = vmatprep.subr.bf16.mxu0 0
        %1022 = vmatpush1.bf16.msra.mxu0 %v1017
        %1023 = vmatprep.subr.bf16.mxu0 0
        %1024 = vmatpush1.bf16.msra.mxu0 %v1018
        %1025 = vmatprep.subr.bf16.mxu0 0
        %1026 = vmatpush1.bf16.msra.mxu0 0
        %1027 = vmatprep.subr.bf16.mxu0 0
        %1028 = vmatpush1.bf16.msra.mxu0 0
        %1029 = vmatprep.subr.bf16.mxu0 0
        %1030 = vmatpush1.bf16.msra.mxu0 0
        %1031 = vmatprep.subr.bf16.mxu0 0
        %1032 = vmatpush1.bf16.msra.mxu0 0
        %1033 = vmatprep.subr.bf16.mxu0 0
        %1034 = vmatpush1.bf16.msra.mxu0 0
        %1035 = vmatprep.subr.bf16.mxu0 0
        %1036 = vmatpush1.bf16.msra.mxu0 0
        %1037 = vmatprep.subr.bf16.mxu0 0
        %1038 = vmatpush1.bf16.msra.mxu0 0
        %1039 = vmatprep.subr.bf16.mxu0 0
        %1040 = vmatpush1.bf16.msra.mxu0 0
        %1041 = vmatprep.subr.bf16.mxu0 0
        %1042 = vmatpush1.bf16.msra.mxu0 0
        %1043 = vmatprep.subr.bf16.mxu0 0
        %1044 = vmatpush1.bf16.msra.mxu0 0
        %1045 = vmatprep.subr.bf16.mxu0 0
        %1046 = vmatpush1.bf16.msra.mxu0 0
        %1047 = vmatprep.subr.bf16.mxu0 0
        %1048 = vmatpush1.bf16.msra.mxu0 0
        %1049 = vmatprep.subr.bf16.mxu0 0
        %1050 = vmatpush1.bf16.msra.mxu0 0
        %1051 = vmatprep.subr.bf16.mxu0 0
        %1052 = vmatpush1.bf16.msra.mxu0 0
        %1053 = vmatprep.mubr.bf16.mxu0 0
        %1054 = vmatmul.mubr.bf16.gmra.mrb[0].mxu0 %v681
        %v1055 = vpop.f32.mrb[0].mxu0
        %v1056 = vadd.f32 0.0, %v1055
        %v1057 = vpop.f32.mrb[0].mxu0
        %v1058 = vpop.f32.mrb[0].mxu0
        %v1059 = vadd.f32 0.0, %v1058
        %v1060 = vpop.f32.mrb[0].mxu0
        %1061 = vdwg.mxu0
        %v1062 = vpack.c.bf16 %v941, %v941
        %v1063 = vpack.c.bf16 %v1001, %v998
        %v1065 = vsel %vm783, %v1062, 0
        %v1068 = vsel %vm783, %v1063, 0
        %1070 = vmatprep.subr.bf16.mxu0 0
        %1071 = vmatpush1.bf16.xpose.msra.mxu0 %v1068
        %1072 = vmatprep.subr.bf16.mxu0 0
        %1073 = vmatpush1.bf16.xpose.msra.mxu0 0
        %1074 = vmatprep.subr.bf16.mxu0 0
        %1075 = vmatpush1.bf16.xpose.msra.mxu0 0
        %1076 = vmatprep.subr.bf16.mxu0 0
        %1077 = vmatpush1.bf16.xpose.msra.mxu0 0
        %1078 = vmatprep.subr.bf16.mxu0 0
        %1079 = vmatpush1.bf16.xpose.msra.mxu0 0
        %1080 = vmatprep.subr.bf16.mxu0 0
        %1081 = vmatpush1.bf16.xpose.msra.mxu0 0
        %1082 = vmatprep.subr.bf16.mxu0 0
        %1083 = vmatpush1.bf16.xpose.msra.mxu0 0
        %1084 = vmatprep.subr.bf16.mxu0 0
        %1085 = vmatpush1.bf16.xpose.msra.mxu0 0
        %1086 = vmatprep.subr.bf16.mxu0 0
        %1087 = vmatpush1.bf16.xpose.msra.mxu0 0
        %1088 = vmatprep.subr.bf16.mxu0 0
        %1089 = vmatpush1.bf16.xpose.msra.mxu0 0
        %1090 = vmatprep.subr.bf16.mxu0 0
        %1091 = vmatpush1.bf16.xpose.msra.mxu0 0
        %1092 = vmatprep.subr.bf16.mxu0 0
        %1093 = vmatpush1.bf16.xpose.msra.mxu0 0
        %1094 = vmatprep.subr.bf16.mxu0 0
        %1095 = vmatpush1.bf16.xpose.msra.mxu0 0
        %1096 = vmatprep.subr.bf16.mxu0 0
        %1097 = vmatpush1.bf16.xpose.msra.mxu0 0
        %1098 = vmatprep.subr.bf16.mxu0 0
        %1099 = vmatpush1.bf16.xpose.msra.mxu0 0
        %1100 = vmatprep.subr.bf16.mxu0 0
        %1101 = vmatpush1.bf16.xpose.msra.mxu0 0
        %1102 = vmatprep.mubr.bf16.mxu0 0
        %1103 = vmatmul.mubr.bf16.gmra.mrb[0].mxu0 %v1065
        %v1104 = vpop.f32.mrb[0].mxu0
        %v1105 = vadd.f32 0.0, %v1104
        %v1106 = vpop.f32.mrb[0].mxu0
        %v1107 = vpop.f32.mrb[0].mxu0
        %v1108 = vpop.f32.mrb[0].mxu0
        %1109 = vdwg.mxu0
        %v1110 = vsel %vm830, %v1105, -inf
        %1111 = vmax.xlane.f32.xlu0 %v1110
        %v1112 = vpop.xlane.xlu0 %1111
        %v1113 = vsub.f32 %v1105, %v1112
        %v1114 = vmul.f32 %v1113, 1.442695
        %v1115 = vpow.pop %v1114
        %v1116 = vsel %vm830, %v1115, 0.0
        %1117 = vadd.xlane.f32.xlu0 %v1116
        %v1118 = vpop.xlane.xlu0 %1117
        %v1119 = vrcp.pop %v1118
        %v1120 = vmul.f32 %v1115, %v1119
        %v1121 = vpack.c.bf16 %v1120, %v1120
        %v1122 = vpack.c.bf16 %v1059, %v1056
        %v1124 = vsel %vm830, %v1121, 0
        %1126 = vmatprep.subr.bf16.mxu0 0
        %1127 = vmatpush1.bf16.msra.mxu0 %v1122
        %1128 = vmatprep.subr.bf16.mxu0 0
        %1129 = vmatpush1.bf16.msra.mxu0 0
        %1130 = vmatprep.subr.bf16.mxu0 0
        %1131 = vmatpush1.bf16.msra.mxu0 0
        %1132 = vmatprep.subr.bf16.mxu0 0
        %1133 = vmatpush1.bf16.msra.mxu0 0
        %1134 = vmatprep.subr.bf16.mxu0 0
        %1135 = vmatpush1.bf16.msra.mxu0 0
        %1136 = vmatprep.subr.bf16.mxu0 0
        %1137 = vmatpush1.bf16.msra.mxu0 0
        %1138 = vmatprep.subr.bf16.mxu0 0
        %1139 = vmatpush1.bf16.msra.mxu0 0
        %1140 = vmatprep.subr.bf16.mxu0 0
        %1141 = vmatpush1.bf16.msra.mxu0 0
        %1142 = vmatprep.subr.bf16.mxu0 0
        %1143 = vmatpush1.bf16.msra.mxu0 0
        %1144 = vmatprep.subr.bf16.mxu0 0
        %1145 = vmatpush1.bf16.msra.mxu0 0
        %1146 = vmatprep.subr.bf16.mxu0 0
        %1147 = vmatpush1.bf16.msra.mxu0 0
        %1148 = vmatprep.subr.bf16.mxu0 0
        %1149 = vmatpush1.bf16.msra.mxu0 0
        %1150 = vmatprep.subr.bf16.mxu0 0
        %1151 = vmatpush1.bf16.msra.mxu0 0
        %1152 = vmatprep.subr.bf16.mxu0 0
        %1153 = vmatpush1.bf16.msra.mxu0 0
        %1154 = vmatprep.subr.bf16.mxu0 0
        %1155 = vmatpush1.bf16.msra.mxu0 0
        %1156 = vmatprep.subr.bf16.mxu0 0
        %1157 = vmatpush1.bf16.msra.mxu0 0
        %1158 = vmatprep.mubr.bf16.mxu0 0
        %1159 = vmatmul.mubr.bf16.gmra.mrb[0].mxu0 %v1124
        %v1160 = vpop.f32.mrb[0].mxu0
        %v1161 = vadd.f32 0.0, %v1160
        %v1162 = vpop.f32.mrb[0].mxu0
        %v1163 = vpop.f32.mrb[0].mxu0
        %v1164 = vpop.f32.mrb[0].mxu0
        %1165 = vdwg.mxu0
        %v1166 = vpack.c.bf16 %v1161, %v1161
        %s1167 = scalar_lea.vmem %s7, 4
        %v1168 = vld [vmem:[%s1167] sm:$0xf]
        %v1170 = vsel %vm783, %v1166, 0
        %vm1172 = vcmask 1043456
        %v1174 = vsel %vm1172, %v1168, 0
        %1176 = vmatprep.subr.bf16.mxu0 0
        %1177 = vmatpush1.bf16.msra.mxu0 %v1174
        %1178 = vmatprep.subr.bf16.mxu0 0
        %1179 = vmatpush1.bf16.msra.mxu0 0
        %1180 = vmatprep.subr.bf16.mxu0 0
        %1181 = vmatpush1.bf16.msra.mxu0 0
        %1182 = vmatprep.subr.bf16.mxu0 0
        %1183 = vmatpush1.bf16.msra.mxu0 0
        %1184 = vmatprep.subr.bf16.mxu0 0
        %1185 = vmatpush1.bf16.msra.mxu0 0
        %1186 = vmatprep.subr.bf16.mxu0 0
        %1187 = vmatpush1.bf16.msra.mxu0 0
        %1188 = vmatprep.subr.bf16.mxu0 0
        %1189 = vmatpush1.bf16.msra.mxu0 0
        %1190 = vmatprep.subr.bf16.mxu0 0
        %1191 = vmatpush1.bf16.msra.mxu0 0
        %1192 = vmatprep.subr.bf16.mxu0 0
        %1193 = vmatpush1.bf16.msra.mxu0 0
        %1194 = vmatprep.subr.bf16.mxu0 0
        %1195 = vmatpush1.bf16.msra.mxu0 0
        %1196 = vmatprep.subr.bf16.mxu0 0
        %1197 = vmatpush1.bf16.msra.mxu0 0
        %1198 = vmatprep.subr.bf16.mxu0 0
        %1199 = vmatpush1.bf16.msra.mxu0 0
        %1200 = vmatprep.subr.bf16.mxu0 0
        %1201 = vmatpush1.bf16.msra.mxu0 0
        %1202 = vmatprep.subr.bf16.mxu0 0
        %1203 = vmatpush1.bf16.msra.mxu0 0
        %1204 = vmatprep.subr.bf16.mxu0 0
        %1205 = vmatpush1.bf16.msra.mxu0 0
        %1206 = vmatprep.subr.bf16.mxu0 0
        %1207 = vmatpush1.bf16.msra.mxu0 0
        %1208 = vmatprep.mubr.bf16.mxu0 0
        %1209 = vmatmul.mubr.bf16.gmra.mrb[0].mxu0 %v1170
        %v1210 = vpop.f32.mrb[0].mxu0
        %v1211 = vadd.f32 0.0, %v1210
        %v1212 = vpop.f32.mrb[0].mxu0
        %v1213 = vpop.f32.mrb[0].mxu0
        %v1214 = vpop.f32.mrb[0].mxu0
        %1215 = vdwg.mxu0
        %v1217 = vsel %vm783, %v887, 0
        %v1220 = vsel %vm1172, %v888, 0
        %1222 = vmatprep.subr.bf16.mxu0 0
        %1223 = vmatpush1.bf16.msra.mxu0 %v1220
        %1224 = vmatprep.subr.bf16.mxu0 0
        %1225 = vmatpush1.bf16.msra.mxu0 0
        %1226 = vmatprep.subr.bf16.mxu0 0
        %1227 = vmatpush1.bf16.msra.mxu0 0
        %1228 = vmatprep.subr.bf16.mxu0 0
        %1229 = vmatpush1.bf16.msra.mxu0 0
        %1230 = vmatprep.subr.bf16.mxu0 0
        %1231 = vmatpush1.bf16.msra.mxu0 0
        %1232 = vmatprep.subr.bf16.mxu0 0
        %1233 = vmatpush1.bf16.msra.mxu0 0
        %1234 = vmatprep.subr.bf16.mxu0 0
        %1235 = vmatpush1.bf16.msra.mxu0 0
        %1236 = vmatprep.subr.bf16.mxu0 0
        %1237 = vmatpush1.bf16.msra.mxu0 0
        %1238 = vmatprep.subr.bf16.mxu0 0
        %1239 = vmatpush1.bf16.msra.mxu0 0
        %1240 = vmatprep.subr.bf16.mxu0 0
        %1241 = vmatpush1.bf16.msra.mxu0 0
        %1242 = vmatprep.subr.bf16.mxu0 0
        %1243 = vmatpush1.bf16.msra.mxu0 0
        %1244 = vmatprep.subr.bf16.mxu0 0
        %1245 = vmatpush1.bf16.msra.mxu0 0
        %1246 = vmatprep.subr.bf16.mxu0 0
        %1247 = vmatpush1.bf16.msra.mxu0 0
        %1248 = vmatprep.subr.bf16.mxu0 0
        %1249 = vmatpush1.bf16.msra.mxu0 0
        %1250 = vmatprep.subr.bf16.mxu0 0
        %1251 = vmatpush1.bf16.msra.mxu0 0
        %1252 = vmatprep.subr.bf16.mxu0 0
        %1253 = vmatpush1.bf16.msra.mxu0 0
        %1254 = vmatprep.mubr.bf16.mxu0 0
        %1255 = vmatmul.mubr.bf16.gmra.mrb[0].mxu0 %v1217
        %v1256 = vpop.f32.mrb[0].mxu0
        %v1257 = vadd.f32 %v1211, %v1256
        %v1258 = vpop.f32.mrb[0].mxu0
        %v1259 = vpop.f32.mrb[0].mxu0
        %v1260 = vpop.f32.mrb[0].mxu0
        %1261 = vdwg.mxu0
        %s1262 = scalar_lea.vmem %s4, 32
        %v1263 = vld [vmem:[%s1262] sm:$0xf]
        %v1264 = vld [vmem:[%s1262 + $0x4] sm:$0xf]
        %v1265 = vld [vmem:[%s1262 + $0x8] sm:$0xf]
        %v1266 = vld [vmem:[%s1262 + $0xc] sm:$0xf]
        %v1271 = vunpack.c.l.b16 %v1263
        %v1272 = vunpack.c.l.b16 %v1264
        %v1273 = vunpack.c.l.b16 %v1265
        %v1274 = vunpack.c.l.b16 %v1266
        %v1275 = vpack.c.b16 %v1272, %v1271
        %v1276 = vpack.c.b16 %v1274, %v1273
        %1279 = vmatprep.subr.bf16.mxu0 0
        %1280 = vmatpush1.bf16.msra.mxu0 %v1275
        %1281 = vmatprep.subr.bf16.mxu0 0
        %1282 = vmatpush1.bf16.msra.mxu0 %v1276
        %1283 = vmatprep.subr.bf16.mxu0 0
        %1284 = vmatpush1.bf16.msra.mxu0 0
        %1285 = vmatprep.subr.bf16.mxu0 0
        %1286 = vmatpush1.bf16.msra.mxu0 0
        %1287 = vmatprep.subr.bf16.mxu0 0
        %1288 = vmatpush1.bf16.msra.mxu0 0
        %1289 = vmatprep.subr.bf16.mxu0 0
        %1290 = vmatpush1.bf16.msra.mxu0 0
        %1291 = vmatprep.subr.bf16.mxu0 0
        %1292 = vmatpush1.bf16.msra.mxu0 0
        %1293 = vmatprep.subr.bf16.mxu0 0
        %1294 = vmatpush1.bf16.msra.mxu0 0
        %1295 = vmatprep.subr.bf16.mxu0 0
        %1296 = vmatpush1.bf16.msra.mxu0 0
        %1297 = vmatprep.subr.bf16.mxu0 0
        %1298 = vmatpush1.bf16.msra.mxu0 0
        %1299 = vmatprep.subr.bf16.mxu0 0
        %1300 = vmatpush1.bf16.msra.mxu0 0
        %1301 = vmatprep.subr.bf16.mxu0 0
        %1302 = vmatpush1.bf16.msra.mxu0 0
        %1303 = vmatprep.subr.bf16.mxu0 0
        %1304 = vmatpush1.bf16.msra.mxu0 0
        %1305 = vmatprep.subr.bf16.mxu0 0
        %1306 = vmatpush1.bf16.msra.mxu0 0
        %1307 = vmatprep.subr.bf16.mxu0 0
        %1308 = vmatpush1.bf16.msra.mxu0 0
        %1309 = vmatprep.subr.bf16.mxu0 0
        %1310 = vmatpush1.bf16.msra.mxu0 0
        %1311 = vmatprep.mubr.bf16.mxu0 0
        %1312 = vmatmul.mubr.bf16.gmra.mrb[0].mxu0 %v622
        %v1313 = vpop.f32.mrb[0].mxu0
        %v1314 = vadd.f32 0.0, %v1313
        %v1315 = vpop.f32.mrb[0].mxu0
        %v1316 = vpop.f32.mrb[0].mxu0
        %v1317 = vpop.f32.mrb[0].mxu0
        %1318 = vdwg.mxu0
        %s1319 = scalar_lea.vmem %s5, 32
        %v1320 = vld [vmem:[%s1319] sm:$0xf]
        %v1321 = vld [vmem:[%s1319 + $0x4] sm:$0xf]
        %v1322 = vld [vmem:[%s1319 + $0x8] sm:$0xf]
        %v1323 = vld [vmem:[%s1319 + $0xc] sm:$0xf]
        %v1328 = vunpack.c.l.b16 %v1320
        %v1329 = vunpack.c.l.b16 %v1321
        %v1330 = vunpack.c.l.b16 %v1322
        %v1331 = vunpack.c.l.b16 %v1323
        %v1332 = vpack.c.b16 %v1329, %v1328
        %v1333 = vpack.c.b16 %v1331, %v1330
        %1336 = vmatprep.subr.bf16.mxu0 0
        %1337 = vmatpush1.bf16.msra.mxu0 %v1332
        %1338 = vmatprep.subr.bf16.mxu0 0
        %1339 = vmatpush1.bf16.msra.mxu0 %v1333
        %1340 = vmatprep.subr.bf16.mxu0 0
        %1341 = vmatpush1.bf16.msra.mxu0 0
        %1342 = vmatprep.subr.bf16.mxu0 0
        %1343 = vmatpush1.bf16.msra.mxu0 0
        %1344 = vmatprep.subr.bf16.mxu0 0
        %1345 = vmatpush1.bf16.msra.mxu0 0
        %1346 = vmatprep.subr.bf16.mxu0 0
        %1347 = vmatpush1.bf16.msra.mxu0 0
        %1348 = vmatprep.subr.bf16.mxu0 0
        %1349 = vmatpush1.bf16.msra.mxu0 0
        %1350 = vmatprep.subr.bf16.mxu0 0
        %1351 = vmatpush1.bf16.msra.mxu0 0
        %1352 = vmatprep.subr.bf16.mxu0 0
        %1353 = vmatpush1.bf16.msra.mxu0 0
        %1354 = vmatprep.subr.bf16.mxu0 0
        %1355 = vmatpush1.bf16.msra.mxu0 0
        %1356 = vmatprep.subr.bf16.mxu0 0
        %1357 = vmatpush1.bf16.msra.mxu0 0
        %1358 = vmatprep.subr.bf16.mxu0 0
        %1359 = vmatpush1.bf16.msra.mxu0 0
        %1360 = vmatprep.subr.bf16.mxu0 0
        %1361 = vmatpush1.bf16.msra.mxu0 0
        %1362 = vmatprep.subr.bf16.mxu0 0
        %1363 = vmatpush1.bf16.msra.mxu0 0
        %1364 = vmatprep.subr.bf16.mxu0 0
        %1365 = vmatpush1.bf16.msra.mxu0 0
        %1366 = vmatprep.subr.bf16.mxu0 0
        %1367 = vmatpush1.bf16.msra.mxu0 0
        %1368 = vmatprep.mubr.bf16.mxu0 0
        %1369 = vmatmul.mubr.bf16.gmra.mrb[0].mxu0 %v681
        %v1370 = vpop.f32.mrb[0].mxu0
        %v1371 = vadd.f32 0.0, %v1370
        %v1372 = vpop.f32.mrb[0].mxu0
        %v1373 = vpop.f32.mrb[0].mxu0
        %v1374 = vadd.f32 0.0, %v1373
        %v1375 = vpop.f32.mrb[0].mxu0
        %1376 = vdwg.mxu0
        %s1377 = scalar_lea.vmem %s6, 32
        %v1378 = vld [vmem:[%s1377] sm:$0xf]
        %v1379 = vld [vmem:[%s1377 + $0x4] sm:$0xf]
        %v1380 = vld [vmem:[%s1377 + $0x8] sm:$0xf]
        %v1381 = vld [vmem:[%s1377 + $0xc] sm:$0xf]
        %v1386 = vunpack.c.l.b16 %v1378
        %v1387 = vunpack.c.l.b16 %v1379
        %v1388 = vunpack.c.l.b16 %v1380
        %v1389 = vunpack.c.l.b16 %v1381
        %v1390 = vpack.c.b16 %v1387, %v1386
        %v1391 = vpack.c.b16 %v1389, %v1388
        %1394 = vmatprep.subr.bf16.mxu0 0
        %1395 = vmatpush1.bf16.msra.mxu0 %v1390
        %1396 = vmatprep.subr.bf16.mxu0 0
        %1397 = vmatpush1.bf16.msra.mxu0 %v1391
        %1398 = vmatprep.subr.bf16.mxu0 0
        %1399 = vmatpush1.bf16.msra.mxu0 0
        %1400 = vmatprep.subr.bf16.mxu0 0
        %1401 = vmatpush1.bf16.msra.mxu0 0
        %1402 = vmatprep.subr.bf16.mxu0 0
        %1403 = vmatpush1.bf16.msra.mxu0 0
        %1404 = vmatprep.subr.bf16.mxu0 0
        %1405 = vmatpush1.bf16.msra.mxu0 0
        %1406 = vmatprep.subr.bf16.mxu0 0
        %1407 = vmatpush1.bf16.msra.mxu0 0
        %1408 = vmatprep.subr.bf16.mxu0 0
        %1409 = vmatpush1.bf16.msra.mxu0 0
        %1410 = vmatprep.subr.bf16.mxu0 0
        %1411 = vmatpush1.bf16.msra.mxu0 0
        %1412 = vmatprep.subr.bf16.mxu0 0
        %1413 = vmatpush1.bf16.msra.mxu0 0
        %1414 = vmatprep.subr.bf16.mxu0 0
        %1415 = vmatpush1.bf16.msra.mxu0 0
        %1416 = vmatprep.subr.bf16.mxu0 0
        %1417 = vmatpush1.bf16.msra.mxu0 0
        %1418 = vmatprep.subr.bf16.mxu0 0
        %1419 = vmatpush1.bf16.msra.mxu0 0
        %1420 = vmatprep.subr.bf16.mxu0 0
        %1421 = vmatpush1.bf16.msra.mxu0 0
        %1422 = vmatprep.subr.bf16.mxu0 0
        %1423 = vmatpush1.bf16.msra.mxu0 0
        %1424 = vmatprep.subr.bf16.mxu0 0
        %1425 = vmatpush1.bf16.msra.mxu0 0
        %1426 = vmatprep.mubr.bf16.mxu0 0
        %1427 = vmatmul.mubr.bf16.gmra.mrb[0].mxu0 %v681
        %v1428 = vpop.f32.mrb[0].mxu0
        %v1429 = vadd.f32 0.0, %v1428
        %v1430 = vpop.f32.mrb[0].mxu0
        %v1431 = vpop.f32.mrb[0].mxu0
        %v1432 = vadd.f32 0.0, %v1431
        %v1433 = vpop.f32.mrb[0].mxu0
        %1434 = vdwg.mxu0
        %v1435 = vpack.c.bf16 %v1314, %v1314
        %v1436 = vpack.c.bf16 %v1374, %v1371
        %v1438 = vsel %vm783, %v1435, 0
        %v1441 = vsel %vm783, %v1436, 0
        %1443 = vmatprep.subr.bf16.mxu0 0
        %1444 = vmatpush1.bf16.xpose.msra.mxu0 %v1441
        %1445 = vmatprep.subr.bf16.mxu0 0
        %1446 = vmatpush1.bf16.xpose.msra.mxu0 0
        %1447 = vmatprep.subr.bf16.mxu0 0
        %1448 = vmatpush1.bf16.xpose.msra.mxu0 0
        %1449 = vmatprep.subr.bf16.mxu0 0
        %1450 = vmatpush1.bf16.xpose.msra.mxu0 0
        %1451 = vmatprep.subr.bf16.mxu0 0
        %1452 = vmatpush1.bf16.xpose.msra.mxu0 0
        %1453 = vmatprep.subr.bf16.mxu0 0
        %1454 = vmatpush1.bf16.xpose.msra.mxu0 0
        %1455 = vmatprep.subr.bf16.mxu0 0
        %1456 = vmatpush1.bf16.xpose.msra.mxu0 0
        %1457 = vmatprep.subr.bf16.mxu0 0
        %1458 = vmatpush1.bf16.xpose.msra.mxu0 0
        %1459 = vmatprep.subr.bf16.mxu0 0
        %1460 = vmatpush1.bf16.xpose.msra.mxu0 0
        %1461 = vmatprep.subr.bf16.mxu0 0
        %1462 = vmatpush1.bf16.xpose.msra.mxu0 0
        %1463 = vmatprep.subr.bf16.mxu0 0
        %1464 = vmatpush1.bf16.xpose.msra.mxu0 0
        %1465 = vmatprep.subr.bf16.mxu0 0
        %1466 = vmatpush1.bf16.xpose.msra.mxu0 0
        %1467 = vmatprep.subr.bf16.mxu0 0
        %1468 = vmatpush1.bf16.xpose.msra.mxu0 0
        %1469 = vmatprep.subr.bf16.mxu0 0
        %1470 = vmatpush1.bf16.xpose.msra.mxu0 0
        %1471 = vmatprep.subr.bf16.mxu0 0
        %1472 = vmatpush1.bf16.xpose.msra.mxu0 0
        %1473 = vmatprep.subr.bf16.mxu0 0
        %1474 = vmatpush1.bf16.xpose.msra.mxu0 0
        %1475 = vmatprep.mubr.bf16.mxu0 0
        %1476 = vmatmul.mubr.bf16.gmra.mrb[0].mxu0 %v1438
        %v1477 = vpop.f32.mrb[0].mxu0
        %v1478 = vadd.f32 0.0, %v1477
        %v1479 = vpop.f32.mrb[0].mxu0
        %v1480 = vpop.f32.mrb[0].mxu0
        %v1481 = vpop.f32.mrb[0].mxu0
        %1482 = vdwg.mxu0
        %v1483 = vsel %vm830, %v1478, -inf
        %1484 = vmax.xlane.f32.xlu0 %v1483
        %v1485 = vpop.xlane.xlu0 %1484
        %v1486 = vsub.f32 %v1478, %v1485
        %v1487 = vmul.f32 %v1486, 1.442695
        %v1488 = vpow.pop %v1487
        %v1489 = vsel %vm830, %v1488, 0.0
        %1490 = vadd.xlane.f32.xlu0 %v1489
        %v1491 = vpop.xlane.xlu0 %1490
        %v1492 = vrcp.pop %v1491
        %v1493 = vmul.f32 %v1488, %v1492
        %v1494 = vpack.c.bf16 %v1493, %v1493
        %v1495 = vpack.c.bf16 %v1432, %v1429
        %v1497 = vsel %vm830, %v1494, 0
        %1499 = vmatprep.subr.bf16.mxu0 0
        %1500 = vmatpush1.bf16.msra.mxu0 %v1495
        %1501 = vmatprep.subr.bf16.mxu0 0
        %1502 = vmatpush1.bf16.msra.mxu0 0
        %1503 = vmatprep.subr.bf16.mxu0 0
        %1504 = vmatpush1.bf16.msra.mxu0 0
        %1505 = vmatprep.subr.bf16.mxu0 0
        %1506 = vmatpush1.bf16.msra.mxu0 0
        %1507 = vmatprep.subr.bf16.mxu0 0
        %1508 = vmatpush1.bf16.msra.mxu0 0
        %1509 = vmatprep.subr.bf16.mxu0 0
        %1510 = vmatpush1.bf16.msra.mxu0 0
        %1511 = vmatprep.subr.bf16.mxu0 0
        %1512 = vmatpush1.bf16.msra.mxu0 0
        %1513 = vmatprep.subr.bf16.mxu0 0
        %1514 = vmatpush1.bf16.msra.mxu0 0
        %1515 = vmatprep.subr.bf16.mxu0 0
        %1516 = vmatpush1.bf16.msra.mxu0 0
        %1517 = vmatprep.subr.bf16.mxu0 0
        %1518 = vmatpush1.bf16.msra.mxu0 0
        %1519 = vmatprep.subr.bf16.mxu0 0
        %1520 = vmatpush1.bf16.msra.mxu0 0
        %1521 = vmatprep.subr.bf16.mxu0 0
        %1522 = vmatpush1.bf16.msra.mxu0 0
        %1523 = vmatprep.subr.bf16.mxu0 0
        %1524 = vmatpush1.bf16.msra.mxu0 0
        %1525 = vmatprep.subr.bf16.mxu0 0
        %1526 = vmatpush1.bf16.msra.mxu0 0
        %1527 = vmatprep.subr.bf16.mxu0 0
        %1528 = vmatpush1.bf16.msra.mxu0 0
        %1529 = vmatprep.subr.bf16.mxu0 0
        %1530 = vmatpush1.bf16.msra.mxu0 0
        %1531 = vmatprep.mubr.bf16.mxu0 0
        %1532 = vmatmul.mubr.bf16.gmra.mrb[0].mxu0 %v1497
        %v1533 = vpop.f32.mrb[0].mxu0
        %v1534 = vadd.f32 0.0, %v1533
        %v1535 = vpop.f32.mrb[0].mxu0
        %v1536 = vpop.f32.mrb[0].mxu0
        %v1537 = vpop.f32.mrb[0].mxu0
        %1538 = vdwg.mxu0
        %v1539 = vpack.c.bf16 %v1534, %v1534
        %s1540 = scalar_lea.vmem %s7, 8
        %v1541 = vld [vmem:[%s1540] sm:$0xf]
        %v1543 = vsel %vm783, %v1539, 0
        %v1546 = vsel %vm1172, %v1541, 0
        %1548 = vmatprep.subr.bf16.mxu0 0
        %1549 = vmatpush1.bf16.msra.mxu0 %v1546
        %1550 = vmatprep.subr.bf16.mxu0 0
        %1551 = vmatpush1.bf16.msra.mxu0 0
        %1552 = vmatprep.subr.bf16.mxu0 0
        %1553 = vmatpush1.bf16.msra.mxu0 0
        %1554 = vmatprep.subr.bf16.mxu0 0
        %1555 = vmatpush1.bf16.msra.mxu0 0
        %1556 = vmatprep.subr.bf16.mxu0 0
        %1557 = vmatpush1.bf16.msra.mxu0 0
        %1558 = vmatprep.subr.bf16.mxu0 0
        %1559 = vmatpush1.bf16.msra.mxu0 0
        %1560 = vmatprep.subr.bf16.mxu0 0
        %1561 = vmatpush1.bf16.msra.mxu0 0
        %1562 = vmatprep.subr.bf16.mxu0 0
        %1563 = vmatpush1.bf16.msra.mxu0 0
        %1564 = vmatprep.subr.bf16.mxu0 0
        %1565 = vmatpush1.bf16.msra.mxu0 0
        %1566 = vmatprep.subr.bf16.mxu0 0
        %1567 = vmatpush1.bf16.msra.mxu0 0
        %1568 = vmatprep.subr.bf16.mxu0 0
        %1569 = vmatpush1.bf16.msra.mxu0 0
        %1570 = vmatprep.subr.bf16.mxu0 0
        %1571 = vmatpush1.bf16.msra.mxu0 0
        %1572 = vmatprep.subr.bf16.mxu0 0
        %1573 = vmatpush1.bf16.msra.mxu0 0
        %1574 = vmatprep.subr.bf16.mxu0 0
        %1575 = vmatpush1.bf16.msra.mxu0 0
        %1576 = vmatprep.subr.bf16.mxu0 0
        %1577 = vmatpush1.bf16.msra.mxu0 0
        %1578 = vmatprep.subr.bf16.mxu0 0
        %1579 = vmatpush1.bf16.msra.mxu0 0
        %1580 = vmatprep.mubr.bf16.mxu0 0
        %1581 = vmatmul.mubr.bf16.gmra.mrb[0].mxu0 %v1543
        %v1582 = vpop.f32.mrb[0].mxu0
        %v1583 = vadd.f32 0.0, %v1582
        %v1584 = vpop.f32.mrb[0].mxu0
        %v1585 = vpop.f32.mrb[0].mxu0
        %v1586 = vpop.f32.mrb[0].mxu0
        %1587 = vdwg.mxu0
        %v1588 = vadd.f32 %v1257, %v1583
        %s1589 = scalar_lea.vmem %s4, 48
        %v1590 = vld [vmem:[%s1589] sm:$0xf]
        %v1591 = vld [vmem:[%s1589 + $0x4] sm:$0xf]
        %v1592 = vld [vmem:[%s1589 + $0x8] sm:$0xf]
        %v1593 = vld [vmem:[%s1589 + $0xc] sm:$0xf]
        %v1598 = vunpack.c.l.b16 %v1590
        %v1599 = vunpack.c.l.b16 %v1591
        %v1600 = vunpack.c.l.b16 %v1592
        %v1601 = vunpack.c.l.b16 %v1593
        %v1602 = vpack.c.b16 %v1599, %v1598
        %v1603 = vpack.c.b16 %v1601, %v1600
        %1606 = vmatprep.subr.bf16.mxu0 0
        %1607 = vmatpush1.bf16.msra.mxu0 %v1602
        %1608 = vmatprep.subr.bf16.mxu0 0
        %1609 = vmatpush1.bf16.msra.mxu0 %v1603
        %1610 = vmatprep.subr.bf16.mxu0 0
        %1611 = vmatpush1.bf16.msra.mxu0 0
        %1612 = vmatprep.subr.bf16.mxu0 0
        %1613 = vmatpush1.bf16.msra.mxu0 0
        %1614 = vmatprep.subr.bf16.mxu0 0
        %1615 = vmatpush1.bf16.msra.mxu0 0
        %1616 = vmatprep.subr.bf16.mxu0 0
        %1617 = vmatpush1.bf16.msra.mxu0 0
        %1618 = vmatprep.subr.bf16.mxu0 0
        %1619 = vmatpush1.bf16.msra.mxu0 0
        %1620 = vmatprep.subr.bf16.mxu0 0
        %1621 = vmatpush1.bf16.msra.mxu0 0
        %1622 = vmatprep.subr.bf16.mxu0 0
        %1623 = vmatpush1.bf16.msra.mxu0 0
        %1624 = vmatprep.subr.bf16.mxu0 0
        %1625 = vmatpush1.bf16.msra.mxu0 0
        %1626 = vmatprep.subr.bf16.mxu0 0
        %1627 = vmatpush1.bf16.msra.mxu0 0
        %1628 = vmatprep.subr.bf16.mxu0 0
        %1629 = vmatpush1.bf16.msra.mxu0 0
        %1630 = vmatprep.subr.bf16.mxu0 0
        %1631 = vmatpush1.bf16.msra.mxu0 0
        %1632 = vmatprep.subr.bf16.mxu0 0
        %1633 = vmatpush1.bf16.msra.mxu0 0
        %1634 = vmatprep.subr.bf16.mxu0 0
        %1635 = vmatpush1.bf16.msra.mxu0 0
        %1636 = vmatprep.subr.bf16.mxu0 0
        %1637 = vmatpush1.bf16.msra.mxu0 0
        %1638 = vmatprep.mubr.bf16.mxu0 0
        %1639 = vmatmul.mubr.bf16.gmra.mrb[0].mxu0 %v622
        %v1640 = vpop.f32.mrb[0].mxu0
        %v1641 = vadd.f32 0.0, %v1640
        %v1642 = vpop.f32.mrb[0].mxu0
        %v1643 = vpop.f32.mrb[0].mxu0
        %v1644 = vpop.f32.mrb[0].mxu0
        %1645 = vdwg.mxu0
        %s1646 = scalar_lea.vmem %s5, 48
        %v1647 = vld [vmem:[%s1646] sm:$0xf]
        %v1648 = vld [vmem:[%s1646 + $0x4] sm:$0xf]
        %v1649 = vld [vmem:[%s1646 + $0x8] sm:$0xf]
        %v1650 = vld [vmem:[%s1646 + $0xc] sm:$0xf]
        %v1655 = vunpack.c.l.b16 %v1647
        %v1656 = vunpack.c.l.b16 %v1648
        %v1657 = vunpack.c.l.b16 %v1649
        %v1658 = vunpack.c.l.b16 %v1650
        %v1659 = vpack.c.b16 %v1656, %v1655
        %v1660 = vpack.c.b16 %v1658, %v1657
        %1663 = vmatprep.subr.bf16.mxu0 0
        %1664 = vmatpush1.bf16.msra.mxu0 %v1659
        %1665 = vmatprep.subr.bf16.mxu0 0
        %1666 = vmatpush1.bf16.msra.mxu0 %v1660
        %1667 = vmatprep.subr.bf16.mxu0 0
        %1668 = vmatpush1.bf16.msra.mxu0 0
        %1669 = vmatprep.subr.bf16.mxu0 0
        %1670 = vmatpush1.bf16.msra.mxu0 0
        %1671 = vmatprep.subr.bf16.mxu0 0
        %1672 = vmatpush1.bf16.msra.mxu0 0
        %1673 = vmatprep.subr.bf16.mxu0 0
        %1674 = vmatpush1.bf16.msra.mxu0 0
        %1675 = vmatprep.subr.bf16.mxu0 0
        %1676 = vmatpush1.bf16.msra.mxu0 0
        %1677 = vmatprep.subr.bf16.mxu0 0
        %1678 = vmatpush1.bf16.msra.mxu0 0
        %1679 = vmatprep.subr.bf16.mxu0 0
        %1680 = vmatpush1.bf16.msra.mxu0 0
        %1681 = vmatprep.subr.bf16.mxu0 0
        %1682 = vmatpush1.bf16.msra.mxu0 0
        %1683 = vmatprep.subr.bf16.mxu0 0
        %1684 = vmatpush1.bf16.msra.mxu0 0
        %1685 = vmatprep.subr.bf16.mxu0 0
        %1686 = vmatpush1.bf16.msra.mxu0 0
        %1687 = vmatprep.subr.bf16.mxu0 0
        %1688 = vmatpush1.bf16.msra.mxu0 0
        %1689 = vmatprep.subr.bf16.mxu0 0
        %1690 = vmatpush1.bf16.msra.mxu0 0
        %1691 = vmatprep.subr.bf16.mxu0 0
        %1692 = vmatpush1.bf16.msra.mxu0 0
        %1693 = vmatprep.subr.bf16.mxu0 0
        %1694 = vmatpush1.bf16.msra.mxu0 0
        %1695 = vmatprep.mubr.bf16.mxu0 0
        %1696 = vmatmul.mubr.bf16.gmra.mrb[0].mxu0 %v681
        %v1697 = vpop.f32.mrb[0].mxu0
        %v1698 = vadd.f32 0.0, %v1697
        %v1699 = vpop.f32.mrb[0].mxu0
        %v1700 = vpop.f32.mrb[0].mxu0
        %v1701 = vadd.f32 0.0, %v1700
        %v1702 = vpop.f32.mrb[0].mxu0
        %1703 = vdwg.mxu0
        %s1704 = scalar_lea.vmem %s6, 48
        %v1705 = vld [vmem:[%s1704] sm:$0xf]
        %v1706 = vld [vmem:[%s1704 + $0x4] sm:$0xf]
        %v1707 = vld [vmem:[%s1704 + $0x8] sm:$0xf]
        %v1708 = vld [vmem:[%s1704 + $0xc] sm:$0xf]
        %v1713 = vunpack.c.l.b16 %v1705
        %v1714 = vunpack.c.l.b16 %v1706
        %v1715 = vunpack.c.l.b16 %v1707
        %v1716 = vunpack.c.l.b16 %v1708
        %v1717 = vpack.c.b16 %v1714, %v1713
        %v1718 = vpack.c.b16 %v1716, %v1715
        %1721 = vmatprep.subr.bf16.mxu0 0
        %1722 = vmatpush1.bf16.msra.mxu0 %v1717
        %1723 = vmatprep.subr.bf16.mxu0 0
        %1724 = vmatpush1.bf16.msra.mxu0 %v1718
        %1725 = vmatprep.subr.bf16.mxu0 0
        %1726 = vmatpush1.bf16.msra.mxu0 0
        %1727 = vmatprep.subr.bf16.mxu0 0
        %1728 = vmatpush1.bf16.msra.mxu0 0
        %1729 = vmatprep.subr.bf16.mxu0 0
        %1730 = vmatpush1.bf16.msra.mxu0 0
        %1731 = vmatprep.subr.bf16.mxu0 0
        %1732 = vmatpush1.bf16.msra.mxu0 0
        %1733 = vmatprep.subr.bf16.mxu0 0
        %1734 = vmatpush1.bf16.msra.mxu0 0
        %1735 = vmatprep.subr.bf16.mxu0 0
        %1736 = vmatpush1.bf16.msra.mxu0 0
        %1737 = vmatprep.subr.bf16.mxu0 0
        %1738 = vmatpush1.bf16.msra.mxu0 0
        %1739 = vmatprep.subr.bf16.mxu0 0
        %1740 = vmatpush1.bf16.msra.mxu0 0
        %1741 = vmatprep.subr.bf16.mxu0 0
        %1742 = vmatpush1.bf16.msra.mxu0 0
        %1743 = vmatprep.subr.bf16.mxu0 0
        %1744 = vmatpush1.bf16.msra.mxu0 0
        %1745 = vmatprep.subr.bf16.mxu0 0
        %1746 = vmatpush1.bf16.msra.mxu0 0
        %1747 = vmatprep.subr.bf16.mxu0 0
        %1748 = vmatpush1.bf16.msra.mxu0 0
        %1749 = vmatprep.subr.bf16.mxu0 0
        %1750 = vmatpush1.bf16.msra.mxu0 0
        %1751 = vmatprep.subr.bf16.mxu0 0
        %1752 = vmatpush1.bf16.msra.mxu0 0
        %1753 = vmatprep.mubr.bf16.mxu0 0
        %1754 = vmatmul.mubr.bf16.gmra.mrb[0].mxu0 %v681
        %v1755 = vpop.f32.mrb[0].mxu0
        %v1756 = vadd.f32 0.0, %v1755
        %v1757 = vpop.f32.mrb[0].mxu0
        %v1758 = vpop.f32.mrb[0].mxu0
        %v1759 = vadd.f32 0.0, %v1758
        %v1760 = vpop.f32.mrb[0].mxu0
        %1761 = vdwg.mxu0
        %v1762 = vpack.c.bf16 %v1641, %v1641
        %v1763 = vpack.c.bf16 %v1701, %v1698
        %v1765 = vsel %vm783, %v1762, 0
        %v1768 = vsel %vm783, %v1763, 0
        %1770 = vmatprep.subr.bf16.mxu0 0
        %1771 = vmatpush1.bf16.xpose.msra.mxu0 %v1768
        %1772 = vmatprep.subr.bf16.mxu0 0
        %1773 = vmatpush1.bf16.xpose.msra.mxu0 0
        %1774 = vmatprep.subr.bf16.mxu0 0
        %1775 = vmatpush1.bf16.xpose.msra.mxu0 0
        %1776 = vmatprep.subr.bf16.mxu0 0
        %1777 = vmatpush1.bf16.xpose.msra.mxu0 0
        %1778 = vmatprep.subr.bf16.mxu0 0
        %1779 = vmatpush1.bf16.xpose.msra.mxu0 0
        %1780 = vmatprep.subr.bf16.mxu0 0
        %1781 = vmatpush1.bf16.xpose.msra.mxu0 0
        %1782 = vmatprep.subr.bf16.mxu0 0
        %1783 = vmatpush1.bf16.xpose.msra.mxu0 0
        %1784 = vmatprep.subr.bf16.mxu0 0
        %1785 = vmatpush1.bf16.xpose.msra.mxu0 0
        %1786 = vmatprep.subr.bf16.mxu0 0
        %1787 = vmatpush1.bf16.xpose.msra.mxu0 0
        %1788 = vmatprep.subr.bf16.mxu0 0
        %1789 = vmatpush1.bf16.xpose.msra.mxu0 0
        %1790 = vmatprep.subr.bf16.mxu0 0
        %1791 = vmatpush1.bf16.xpose.msra.mxu0 0
        %1792 = vmatprep.subr.bf16.mxu0 0
        %1793 = vmatpush1.bf16.xpose.msra.mxu0 0
        %1794 = vmatprep.subr.bf16.mxu0 0
        %1795 = vmatpush1.bf16.xpose.msra.mxu0 0
        %1796 = vmatprep.subr.bf16.mxu0 0
        %1797 = vmatpush1.bf16.xpose.msra.mxu0 0
        %1798 = vmatprep.subr.bf16.mxu0 0
        %1799 = vmatpush1.bf16.xpose.msra.mxu0 0
        %1800 = vmatprep.subr.bf16.mxu0 0
        %1801 = vmatpush1.bf16.xpose.msra.mxu0 0
        %1802 = vmatprep.mubr.bf16.mxu0 0
        %1803 = vmatmul.mubr.bf16.gmra.mrb[0].mxu0 %v1765
        %v1804 = vpop.f32.mrb[0].mxu0
        %v1805 = vadd.f32 0.0, %v1804
        %v1806 = vpop.f32.mrb[0].mxu0
        %v1807 = vpop.f32.mrb[0].mxu0
        %v1808 = vpop.f32.mrb[0].mxu0
        %1809 = vdwg.mxu0
        %v1810 = vsel %vm830, %v1805, -inf
        %1811 = vmax.xlane.f32.xlu0 %v1810
        %v1812 = vpop.xlane.xlu0 %1811
        %v1813 = vsub.f32 %v1805, %v1812
        %v1814 = vmul.f32 %v1813, 1.442695
        %v1815 = vpow.pop %v1814
        %v1816 = vsel %vm830, %v1815, 0.0
        %1817 = vadd.xlane.f32.xlu0 %v1816
        %v1818 = vpop.xlane.xlu0 %1817
        %v1819 = vrcp.pop %v1818
        %v1820 = vmul.f32 %v1815, %v1819
        %v1821 = vpack.c.bf16 %v1820, %v1820
        %v1822 = vpack.c.bf16 %v1759, %v1756
        %v1824 = vsel %vm830, %v1821, 0
        %1826 = vmatprep.subr.bf16.mxu0 0
        %1827 = vmatpush1.bf16.msra.mxu0 %v1822
        %1828 = vmatprep.subr.bf16.mxu0 0
        %1829 = vmatpush1.bf16.msra.mxu0 0
        %1830 = vmatprep.subr.bf16.mxu0 0
        %1831 = vmatpush1.bf16.msra.mxu0 0
        %1832 = vmatprep.subr.bf16.mxu0 0
        %1833 = vmatpush1.bf16.msra.mxu0 0
        %1834 = vmatprep.subr.bf16.mxu0 0
        %1835 = vmatpush1.bf16.msra.mxu0 0
        %1836 = vmatprep.subr.bf16.mxu0 0
        %1837 = vmatpush1.bf16.msra.mxu0 0
        %1838 = vmatprep.subr.bf16.mxu0 0
        %1839 = vmatpush1.bf16.msra.mxu0 0
        %1840 = vmatprep.subr.bf16.mxu0 0
        %1841 = vmatpush1.bf16.msra.mxu0 0
        %1842 = vmatprep.subr.bf16.mxu0 0
        %1843 = vmatpush1.bf16.msra.mxu0 0
        %1844 = vmatprep.subr.bf16.mxu0 0
        %1845 = vmatpush1.bf16.msra.mxu0 0
        %1846 = vmatprep.subr.bf16.mxu0 0
        %1847 = vmatpush1.bf16.msra.mxu0 0
        %1848 = vmatprep.subr.bf16.mxu0 0
        %1849 = vmatpush1.bf16.msra.mxu0 0
        %1850 = vmatprep.subr.bf16.mxu0 0
        %1851 = vmatpush1.bf16.msra.mxu0 0
        %1852 = vmatprep.subr.bf16.mxu0 0
        %1853 = vmatpush1.bf16.msra.mxu0 0
        %1854 = vmatprep.subr.bf16.mxu0 0
        %1855 = vmatpush1.bf16.msra.mxu0 0
        %1856 = vmatprep.subr.bf16.mxu0 0
        %1857 = vmatpush1.bf16.msra.mxu0 0
        %1858 = vmatprep.mubr.bf16.mxu0 0
        %1859 = vmatmul.mubr.bf16.gmra.mrb[0].mxu0 %v1824
        %v1860 = vpop.f32.mrb[0].mxu0
        %v1861 = vadd.f32 0.0, %v1860
        %v1862 = vpop.f32.mrb[0].mxu0
        %v1863 = vpop.f32.mrb[0].mxu0
        %v1864 = vpop.f32.mrb[0].mxu0
        %1865 = vdwg.mxu0
        %v1866 = vpack.c.bf16 %v1861, %v1861
        %s1867 = scalar_lea.vmem %s7, 12
        %v1868 = vld [vmem:[%s1867] sm:$0xf]
        %v1870 = vsel %vm783, %v1866, 0
        %v1873 = vsel %vm1172, %v1868, 0
        %1875 = vmatprep.subr.bf16.mxu0 0
        %1876 = vmatpush1.bf16.msra.mxu0 %v1873
        %1877 = vmatprep.subr.bf16.mxu0 0
        %1878 = vmatpush1.bf16.msra.mxu0 0
        %1879 = vmatprep.subr.bf16.mxu0 0
        %1880 = vmatpush1.bf16.msra.mxu0 0
        %1881 = vmatprep.subr.bf16.mxu0 0
        %1882 = vmatpush1.bf16.msra.mxu0 0
        %1883 = vmatprep.subr.bf16.mxu0 0
        %1884 = vmatpush1.bf16.msra.mxu0 0
        %1885 = vmatprep.subr.bf16.mxu0 0
        %1886 = vmatpush1.bf16.msra.mxu0 0
        %1887 = vmatprep.subr.bf16.mxu0 0
        %1888 = vmatpush1.bf16.msra.mxu0 0
        %1889 = vmatprep.subr.bf16.mxu0 0
        %1890 = vmatpush1.bf16.msra.mxu0 0
        %1891 = vmatprep.subr.bf16.mxu0 0
        %1892 = vmatpush1.bf16.msra.mxu0 0
        %1893 = vmatprep.subr.bf16.mxu0 0
        %1894 = vmatpush1.bf16.msra.mxu0 0
        %1895 = vmatprep.subr.bf16.mxu0 0
        %1896 = vmatpush1.bf16.msra.mxu0 0
        %1897 = vmatprep.subr.bf16.mxu0 0
        %1898 = vmatpush1.bf16.msra.mxu0 0
        %1899 = vmatprep.subr.bf16.mxu0 0
        %1900 = vmatpush1.bf16.msra.mxu0 0
        %1901 = vmatprep.subr.bf16.mxu0 0
        %1902 = vmatpush1.bf16.msra.mxu0 0
        %1903 = vmatprep.subr.bf16.mxu0 0
        %1904 = vmatpush1.bf16.msra.mxu0 0
        %1905 = vmatprep.subr.bf16.mxu0 0
        %1906 = vmatpush1.bf16.msra.mxu0 0
        %1907 = vmatprep.mubr.bf16.mxu0 0
        %1908 = vmatmul.mubr.bf16.gmra.mrb[0].mxu0 %v1870
        %v1909 = vpop.f32.mrb[0].mxu0
        %v1910 = vadd.f32 0.0, %v1909
        %v1911 = vpop.f32.mrb[0].mxu0
        %v1912 = vpop.f32.mrb[0].mxu0
        %v1913 = vpop.f32.mrb[0].mxu0
        %1914 = vdwg.mxu0
        %v1915 = vadd.f32 %v1588, %v1910
        %v1916 = vld [vmem:[%s8] sm:$0x1]
        %v1918 = vlaneseq
        %v1919 = vshrl.u32 %v1918, 7
        %v1920 = vsub.s32 0, %v1919
        %v1921 = vrot.slane %v1916, %v1920
        %v1923 = vadd.f32 %v1915, %v1921
        %v1924 = vadd.f32 %v541, %v1923
        %v1925 = vld [vmem:[%s9] sm:$0x1]
        %v1926 = vld [vmem:[%s10] sm:$0x1]
        %v1927 = vsel %vm544, %v1924, 0.0
        %1928 = vadd.xlane.f32.xlu0 %v1927
        %v1929 = vpop.xlane.xlu0 %1928
        %v1930 = vmul.f32 %v1929, %v551
        %v1931 = vsub.f32 %v1924, %v1930
        %v1932 = vmul.f32 %v1931, %v1931
        %v1933 = vsel %vm544, %v1932, 0.0
        %1934 = vadd.xlane.f32.xlu0 %v1933
        %v1935 = vpop.xlane.xlu0 %1934
        %v1936 = vmul.f32 %v1935, %v551
        %v1937 = vadd.f32 %v1936, 1e-05
        %v1938 = vrsqrt.pop %v1937
        %v1939 = vmul.f32 %v1931, %v1938
        %v1941 = vlaneseq
        %v1942 = vshrl.u32 %v1941, 7
        %v1943 = vsub.s32 0, %v1942
        %v1944 = vrot.slane %v1925, %v1943
        %v1946 = vmul.f32 %v1939, %v1944
        %v1948 = vlaneseq
        %v1949 = vshrl.u32 %v1948, 7
        %v1950 = vsub.s32 0, %v1949
        %v1951 = vrot.slane %v1926, %v1950
        %v1953 = vadd.f32 %v1946, %v1951
        %v1954 = vpack.c.bf16 %v1953, %v1953
        %v1955 = vld [vmem:[%s11] sm:$0xf]
        %v1956 = vld [vmem:[%s11 + $0x4] sm:$0xf]
        %v1957 = vld [vmem:[%s11 + $0x8] sm:$0xf]
        %v1958 = vld [vmem:[%s11 + $0xc] sm:$0xf]
        %v1959 = vld [vmem:[%s12] sm:$0x1]
        %v1961 = vlaneseq
        %v1962 = vshrl.u32 %v1961, 7
        %v1963 = vsub.s32 0, %v1962
        %v1964 = vrot.slane %v1959, %v1963
        %v1970 = vunpack.c.l.b16 %v1955
        %v1971 = vunpack.c.l.b16 %v1956
        %v1972 = vunpack.c.l.b16 %v1957
        %v1973 = vunpack.c.l.b16 %v1958
        %v1974 = vpack.c.b16 %v1971, %v1970
        %v1975 = vpack.c.b16 %v1973, %v1972
        %v1979 = vsel %vm544, %v1954, 0
        %1981 = vmatprep.subr.bf16.mxu0 0
        %1982 = vmatpush1.bf16.msra.mxu0 %v1974
        %1983 = vmatprep.subr.bf16.mxu0 0
        %1984 = vmatpush1.bf16.msra.mxu0 %v1975
        %1985 = vmatprep.subr.bf16.mxu0 0
        %1986 = vmatpush1.bf16.msra.mxu0 0
        %1987 = vmatprep.subr.bf16.mxu0 0
        %1988 = vmatpush1.bf16.msra.mxu0 0
        %1989 = vmatprep.subr.bf16.mxu0 0
        %1990 = vmatpush1.bf16.msra.mxu0 0
        %1991 = vmatprep.subr.bf16.mxu0 0
        %1992 = vmatpush1.bf16.msra.mxu0 0
        %1993 = vmatprep.subr.bf16.mxu0 0
        %1994 = vmatpush1.bf16.msra.mxu0 0
        %1995 = vmatprep.subr.bf16.mxu0 0
        %1996 = vmatpush1.bf16.msra.mxu0 0
        %1997 = vmatprep.subr.bf16.mxu0 0
        %1998 = vmatpush1.bf16.msra.mxu0 0
        %1999 = vmatprep.subr.bf16.mxu0 0
        %2000 = vmatpush1.bf16.msra.mxu0 0
        %2001 = vmatprep.subr.bf16.mxu0 0
        %2002 = vmatpush1.bf16.msra.mxu0 0
        %2003 = vmatprep.subr.bf16.mxu0 0
        %2004 = vmatpush1.bf16.msra.mxu0 0
        %2005 = vmatprep.subr.bf16.mxu0 0
        %2006 = vmatpush1.bf16.msra.mxu0 0
        %2007 = vmatprep.subr.bf16.mxu0 0
        %2008 = vmatpush1.bf16.msra.mxu0 0
        %2009 = vmatprep.subr.bf16.mxu0 0
        %2010 = vmatpush1.bf16.msra.mxu0 0
        %2011 = vmatprep.subr.bf16.mxu0 0
        %2012 = vmatpush1.bf16.msra.mxu0 0
        %2013 = vmatprep.mubr.bf16.mxu0 0
        %2014 = vmatmul.mubr.bf16.gmra.mrb[0].mxu0 %v1979
        %v2015 = vpop.f32.mrb[0].mxu0
        %v2016 = vadd.f32 %v1964, %v2015
        %v2017 = vpop.f32.mrb[0].mxu0
        %v2018 = vpop.f32.mrb[0].mxu0
        %v2019 = vpop.f32.mrb[0].mxu0
        %2020 = vdwg.mxu0
        %v2021 = vmul.f32 %v2016, %v2016
        %v2022 = vmul.f32 %v2016, %v2021
        %v2023 = vmul.f32 %v2022, 0.044715
        %v2024 = vadd.f32 %v2016, %v2023
        %v2025 = vmul.f32 %v2024, 0.7978846
        %v2026 = vtanh.pop %v2025
        %v2027 = vadd.f32 %v2026, 1.0
        %v2028 = vmul.f32 %v2027, 0.5
        %v2029 = vmul.f32 %v2016, %v2028
        %v2030 = vpack.c.bf16 %v2029, %v2029
        %v2031 = vld [vmem:[%s13] sm:$0xf]
        %v2032 = vld [vmem:[%s13 + $0x4] sm:$0xf]
        %v2033 = vld [vmem:[%s13 + $0x8] sm:$0xf]
        %v2034 = vld [vmem:[%s13 + $0xc] sm:$0xf]
        %v2035 = vld [vmem:[%s13 + $0x10] sm:$0xf]
        %v2036 = vld [vmem:[%s13 + $0x14] sm:$0xf]
        %v2037 = vld [vmem:[%s13 + $0x18] sm:$0xf]
        %v2038 = vld [vmem:[%s13 + $0x1c] sm:$0xf]
        %v2039 = vld [vmem:[%s13 + $0x20] sm:$0xf]
        %v2040 = vld [vmem:[%s13 + $0x24] sm:$0xf]
        %v2041 = vld [vmem:[%s13 + $0x28] sm:$0xf]
        %v2042 = vld [vmem:[%s13 + $0x2c] sm:$0xf]
        %v2043 = vld [vmem:[%s13 + $0x30] sm:$0xf]
        %v2044 = vld [vmem:[%s13 + $0x34] sm:$0xf]
        %v2045 = vld [vmem:[%s13 + $0x38] sm:$0xf]
        %v2046 = vld [vmem:[%s13 + $0x3c] sm:$0xf]
        %v2047 = vld [vmem:[%s14] sm:$0x1]
        %v2049 = vlaneseq
        %v2050 = vshrl.u32 %v2049, 7
        %v2051 = vsub.s32 0, %v2050
        %v2052 = vrot.slane %v2047, %v2051
        %v2070 = vunpack.c.l.b16 %v2031
        %v2071 = vunpack.c.l.b16 %v2032
        %v2072 = vunpack.c.l.b16 %v2033
        %v2073 = vunpack.c.l.b16 %v2034
        %v2074 = vunpack.c.l.b16 %v2035
        %v2075 = vunpack.c.l.b16 %v2036
        %v2076 = vunpack.c.l.b16 %v2037
        %v2077 = vunpack.c.l.b16 %v2038
        %v2078 = vunpack.c.l.b16 %v2039
        %v2079 = vunpack.c.l.b16 %v2040
        %v2080 = vunpack.c.l.b16 %v2041
        %v2081 = vunpack.c.l.b16 %v2042
        %v2082 = vunpack.c.l.b16 %v2043
        %v2083 = vunpack.c.l.b16 %v2044
        %v2084 = vunpack.c.l.b16 %v2045
        %v2085 = vunpack.c.l.b16 %v2046
        %v2086 = vpack.c.b16 %v2071, %v2070
        %v2087 = vpack.c.b16 %v2073, %v2072
        %v2088 = vpack.c.b16 %v2075, %v2074
        %v2089 = vpack.c.b16 %v2077, %v2076
        %v2090 = vpack.c.b16 %v2079, %v2078
        %v2091 = vpack.c.b16 %v2081, %v2080
        %v2092 = vpack.c.b16 %v2083, %v2082
        %v2093 = vpack.c.b16 %v2085, %v2084
        %2102 = vmatprep.subr.bf16.mxu0 0
        %2103 = vmatpush1.bf16.msra.mxu0 %v2086
        %2104 = vmatprep.subr.bf16.mxu0 0
        %2105 = vmatpush1.bf16.msra.mxu0 %v2087
        %2106 = vmatprep.subr.bf16.mxu0 0
        %2107 = vmatpush1.bf16.msra.mxu0 %v2088
        %2108 = vmatprep.subr.bf16.mxu0 0
        %2109 = vmatpush1.bf16.msra.mxu0 %v2089
        %2110 = vmatprep.subr.bf16.mxu0 0
        %2111 = vmatpush1.bf16.msra.mxu0 %v2090
        %2112 = vmatprep.subr.bf16.mxu0 0
        %2113 = vmatpush1.bf16.msra.mxu0 %v2091
        %2114 = vmatprep.subr.bf16.mxu0 0
        %2115 = vmatpush1.bf16.msra.mxu0 %v2092
        %2116 = vmatprep.subr.bf16.mxu0 0
        %2117 = vmatpush1.bf16.msra.mxu0 %v2093
        %2118 = vmatprep.subr.bf16.mxu0 0
        %2119 = vmatpush1.bf16.msra.mxu0 0
        %2120 = vmatprep.subr.bf16.mxu0 0
        %2121 = vmatpush1.bf16.msra.mxu0 0
        %2122 = vmatprep.subr.bf16.mxu0 0
        %2123 = vmatpush1.bf16.msra.mxu0 0
        %2124 = vmatprep.subr.bf16.mxu0 0
        %2125 = vmatpush1.bf16.msra.mxu0 0
        %2126 = vmatprep.subr.bf16.mxu0 0
        %2127 = vmatpush1.bf16.msra.mxu0 0
        %2128 = vmatprep.subr.bf16.mxu0 0
        %2129 = vmatpush1.bf16.msra.mxu0 0
        %2130 = vmatprep.subr.bf16.mxu0 0
        %2131 = vmatpush1.bf16.msra.mxu0 0
        %2132 = vmatprep.subr.bf16.mxu0 0
        %2133 = vmatpush1.bf16.msra.mxu0 0
        %2134 = vmatprep.mubr.bf16.mxu0 0
        %2135 = vmatmul.mubr.bf16.gmra.mrb[0].mxu0 %v2030
        %v2136 = vpop.f32.mrb[0].mxu0
        %v2137 = vadd.f32 %v2052, %v2136
        %v2138 = vpop.f32.mrb[0].mxu0
        %v2139 = vpop.f32.mrb[0].mxu0
        %v2140 = vpop.f32.mrb[0].mxu0
        %2141 = vdwg.mxu0
        %v2142 = vadd.f32 %v1924, %v2137
        %2143 = vst.msk [vmem:[%s524] sm:$0xff] %vm544, %v2142
        %s2144 = sand.u32 %s378, 1
        %s2145 = scalar_lea.sflag [#allocation3], %s2144
        %s2146 = sand.u32 %s378, 1
        %s2147 = smul.addr %s2146, 8
        %s2148 = scalar_lea.vmem [#allocation2], %s2147
        // Predicated region
        $region81: #{tpu_custom_call.1} parent=79 // pred_check
          %p2149 = pneg %p388
        $region82: #{tpu_custom_call.1} parent=79 // pred_check_branch
          %2151 = sbr.rel (%p2149) target = $region84
        $region83: #{tpu_custom_call.1} parent=79 // pred_region
          %s2153 = ssub.s32 128, 128
          %2154 = vsyncadd %s2145, %s2153
          %s2155 = smul.addr %s33, 2
          %s2156 = sadd.s32 %s34, %s2155
          %s2157 = smul.addr %s2156, 128
          %s2158 = scalar_lea.hbm %s15, %s2157
          %s2160 = sshll.u32 %s2148, 4
          %s2161 = int_to_ptr.vmem [resolvable:$true] %s2160
          %2163 = dma.vmem_to_hbm [thread:$0]  %s2161, 128, %s2158, %s2145
        $region84: #{tpu_custom_call.1} parent=79 // pred_fallthru
          _
      $region80: #{tpu_custom_call.1} parent=5 // pred_fallthru
        _
      %p2164 = scmp.le.s32.totalorder 2, %s24
      // Predicated region
      $region85: #{tpu_custom_call.1} parent=5 // pred_check
        %p2165 = pneg %p2164
      $region86: #{tpu_custom_call.1} parent=5 // pred_check_branch
        %2167 = sbr.rel (%p2165) target = $region88
      $region87: #{tpu_custom_call.1} parent=5 // pred_region
        %s2168 = ssub.s32 %s24, 2
        // Predicated region
        $region89: #{tpu_custom_call.1} parent=87 // pred_check
          %p2169 = pneg %p394
        $region90: #{tpu_custom_call.1} parent=87 // pred_check_branch
          %2171 = sbr.rel (%p2169) target = $region92
        $region91: #{tpu_custom_call.1} parent=87 // pred_region
          %s2172 = sand.u32 %s379, 1
          %s2173 = scalar_lea.sflag [#allocation3], %s2172
          %s2174 = sand.u32 %s379, 1
          %s2175 = smul.addr %s2174, 8
          %s2176 = scalar_lea.vmem [#allocation2], %s2175
          %2177 = dma.done %s2173, 128
        $region92: #{tpu_custom_call.1} parent=87 // pred_fallthru
          _
      $region88: #{tpu_custom_call.1} parent=5 // pred_fallthru
        _
    $region6: #{tpu_custom_call.1} parent=1 // loop_footer
      %s28 = sadd.s32 1, %s24
    $region7: #{tpu_custom_call.1} parent=1 // loop_footer_branch
      %23 = sbr.rel target = $region3
    $region8: #{tpu_custom_call.1} parent=1 // loop_exit
      _
    %2178 = vsyncpa [#allocation3], 1
    %s2179 = scalar_lea.sflag [#allocation3], 1
    %2180 = vsyncpa %s2179, 1

</llo_original>
